<compile_context>
chip_gen: v7x
topology: tpu7x:2x2x1
jax: 0.10.0
libtpu: 0.0.40
codegen_flags: <defaults>
</compile_context>

<pallas_src>
import jax
import jax.numpy as jnp
from jax.experimental import pallas as pl
from jax.experimental.pallas import tpu as pltpu


def _round_up(x, m):
    return (x + m - 1) // m * m


def _has_bf16_vpu():
    """bf16 VPU epilogue only on v6e / v7x; v5e (and older) stay in f32."""
    try:
        kind = jax.devices()[0].device_kind.lower()
    except Exception:
        return False
    return ("v6" in kind) or ("v7" in kind) or ("7x" in kind)


def _pick_band_rows(H, W, block_m):
    """Rows per spatial band (multiple of 8) and the padded height."""
    H8 = _round_up(H, 8)
    bh = (block_m // max(W, 1)) // 8 * 8
    bh = max(8, min(bh, H8))
    # Keep at least two bands whenever the (padded) height allows it, so the
    # grid has multiple steps (pipelining + megacore sharding).
    if H8 >= 16 and bh > H8 // 2:
        bh = max(8, (H8 // 2) // 8 * 8)
    H_p = _round_up(H8, bh)
    return bh, H_p


def _scale_pred_kernel(x_ref, w1_ref, shift_ref, w2_ref, b2_ref, out_ref):
    """One (batch, row-band) grid step.

    x_ref:     (bh + 2, W + 2, Cin)  bf16   zero-padded NHWC row band (+1-px halo)
    w1_ref:    (9, Cin, Cmid_p)      bf16   conv3x3 weights, BN scale pre-folded
    shift_ref: (1, Cmid_p)           f32/bf16  folded BN shift
    w2_ref:    (Cmid_p, Cout_p)      bf16   1x1 conv weights
    b2_ref:    (1, Cout_p)           f32    1x1 conv bias
    out_ref:   (bh, W, Cout_p)       f32
    """
    bh, w_out, _ = out_ref.shape
    cin = x_ref.shape[-1]
    m = bh * w_out

    xb = x_ref[...]                                   # single VMEM load of the band

    # ---- conv3x3 via in-VMEM im2col: 9 shifted accumulating MXU matmuls ------
    # (equivalent to one (m, 9*Cin) @ (9*Cin, Cmid_p) matmul; the accumulating
    #  form avoids a minor-dim concat, which only matters when Cin is not a
    #  multiple of 128 — see TODO in the header.)
    h = None
    for k in range(9):
        dy, dx = k // 3, k % 3
        patch = xb[dy:dy + bh, dx:dx + w_out, :].reshape(m, cin)
        part = jnp.dot(patch, w1_ref[k], preferred_element_type=jnp.float32)
        h = part if h is None else h + part

    # ---- BN shift + LeakyReLU(0.1) epilogue (bf16 on v6e/v7x, f32 on v5e) ----
    h = h.astype(shift_ref.dtype) + shift_ref[...]
    h = jnp.where(h > 0, h, 0.1 * h)

    # ---- 1x1 conv (MXU) + bias; lane-dense (Cout_p multiple of 128) store ----
    out = jnp.dot(h.astype(w2_ref.dtype), w2_ref[...],
                  preferred_element_type=jnp.float32) + b2_ref[...]
    out_ref[...] = out.reshape(bh, w_out, -1).astype(out_ref.dtype)


def scale_prediction_pallas(x_nchw, w1, bn_gamma, bn_beta, bn_mean, bn_var,
                            w2, b2, num_classes, eps=1e-5, block_m=256,
                            bf16_epilogue=None):
    """x_nchw: (B, Cin, H, W) f32; w1: (3,3,Cin,2*Cin) HWIO; w2: (2*Cin, Cout).
    Returns (B, 3, H, W, num_classes + 5) f32."""
    B, Cin, H, W = x_nchw.shape
    Cmid = 2 * Cin
    Cout = 3 * (num_classes + 5)

    Cmid_p = _round_up(Cmid, 128)
    Cout_p = _round_up(Cout, 128)

    bh, H_p = _pick_band_rows(H, W, block_m)
    n_bands = H_p // bh

    if bf16_epilogue is None:
        bf16_epilogue = _has_bf16_vpu()
    ep_dtype = jnp.bfloat16 if bf16_epilogue else jnp.float32

    # ---- activations: NHWC, bf16, zero pad (1-px conv halo + band padding) ---
    x_nhwc = jnp.transpose(x_nchw, (0, 2, 3, 1)).astype(jnp.bfloat16)
    x_pad = jnp.pad(x_nhwc, ((0, 0), (1, 1 + (H_p - H)), (1, 1), (0, 0)))
    # Overlapping row bands (bh + 2 rows, stride bh): ~(bh+2)/bh HBM duplication
    # instead of the 9x im2col slab; BlockSpec keeps auto double-buffering.
    x_bands = jnp.stack(
        [x_pad[:, m * bh:m * bh + bh + 2] for m in range(n_bands)], axis=1)
    # x_bands: (B, n_bands, bh + 2, W + 2, Cin)

    # ---- weights: fold BN scale into conv3x3 in f32, then cast; pad channels -
    scale = (bn_gamma / jnp.sqrt(bn_var + eps)).astype(jnp.float32)
    shift = (bn_beta - bn_mean * scale).astype(jnp.float32)
    w1_folded = w1.astype(jnp.float32) * scale[None, None, None, :]
    w1_taps = w1_folded.reshape(9, Cin, Cmid).astype(jnp.bfloat16)
    w1_p = jnp.zeros((9, Cin, Cmid_p), jnp.bfloat16).at[:, :, :Cmid].set(w1_taps)

    shift_p = jnp.zeros((1, Cmid_p), ep_dtype).at[0, :Cmid].set(shift.astype(ep_dtype))
    w2_p = jnp.zeros((Cmid_p, Cout_p), jnp.bfloat16).at[:Cmid, :Cout].set(
        w2.astype(jnp.bfloat16))
    b2_p = jnp.zeros((1, Cout_p), jnp.float32).at[0, :Cout].set(
        b2.astype(jnp.float32))

    # ---- VMEM budget: double-buffered band/out + resident weights + f32 live -
    band_m = bh * W
    est_vmem = (2 * (bh + 2) * (W + 2) * Cin * 2
                + 2 * band_m * Cout_p * 4
                + 2 * (9 * Cin * Cmid_p + Cmid_p * Cout_p) * 2
                + band_m * (Cmid_p + Cout_p) * 4)
    vmem_limit = int(min(100 * 2 ** 20, max(32 * 2 ** 20, 2 * est_vmem)))

    grid = (B, n_bands)

    out_p = pl.pallas_call(
        _scale_pred_kernel,
        out_shape=jax.ShapeDtypeStruct((B, H_p, W, Cout_p), jnp.float32),
        grid_spec=pltpu.PrefetchScalarGridSpec(
            num_scalar_prefetch=0,
            grid=grid,
            in_specs=[
                # overlapping row bands of the padded input (auto double-buffered)
                pl.BlockSpec((None, None, bh + 2, W + 2, Cin),
                             lambda b, m: (b, m, 0, 0, 0)),
                # constant-index (resident) weights / params
                pl.BlockSpec((9, Cin, Cmid_p), lambda b, m: (0, 0, 0)),
                pl.BlockSpec((1, Cmid_p), lambda b, m: (0, 0)),
                pl.BlockSpec((Cmid_p, Cout_p), lambda b, m: (0, 0)),
                pl.BlockSpec((1, Cout_p), lambda b, m: (0, 0)),
            ],
            out_specs=pl.BlockSpec((None, bh, W, Cout_p),
                                   lambda b, m: (b, m, 0, 0)),
        ),
        compiler_params=pltpu.CompilerParams(
            dimension_semantics=("parallel", "parallel"),
            vmem_limit_bytes=vmem_limit),
    )(x_bands, w1_p, shift_p, w2_p, b2_p)

    # (B, H_p, W, Cout_p) -> drop row/channel pad -> (B, H, W, 3, nc+5) -> permute
    out = out_p[:, :H, :, :Cout].reshape(B, H, W, 3, num_classes + 5)
    return jnp.transpose(out, (0, 3, 1, 2, 4))


def _reference_jax(x_nchw, w1, bn_gamma, bn_beta, bn_mean, bn_var, w2, b2,
                   num_classes, eps=1e-5):
    """Pure-JAX f32 reference (lax conv) for a correctness check."""
    y = jax.lax.conv_general_dilated(
        x_nchw, w1, window_strides=(1, 1), padding=((1, 1), (1, 1)),
        dimension_numbers=("NCHW", "HWIO", "NCHW"))
    scale = bn_gamma / jnp.sqrt(bn_var + eps)
    shift = bn_beta - bn_mean * scale
    y = y * scale[None, :, None, None] + shift[None, :, None, None]
    y = jnp.where(y > 0, y, 0.1 * y)
    z = jax.lax.conv_general_dilated(
        y, w2[None, None], window_strides=(1, 1), padding="VALID",
        dimension_numbers=("NCHW", "HWIO", "NCHW"))
    z = z + b2[None, :, None, None]
    B, _, H, W = x_nchw.shape
    return jnp.transpose(z.reshape(B, 3, num_classes + 5, H, W), (0, 1, 3, 4, 2))


if __name__ == "__main__":
    B, Cin, H, W = 2, 4, 16, 16
    num_classes = 3
    Cmid = 2 * Cin
    Cout = 3 * (num_classes + 5)

    key = jax.random.PRNGKey(0)
    k = jax.random.split(key, 4)
    x = jax.random.normal(k[0], (B, Cin, H, W), jnp.float32)

    # Deterministic parameter init (shapes match the PyTorch module).
    w1 = 0.1 * jax.random.normal(k[1], (3, 3, Cin, Cmid), jnp.float32)   # conv3x3, no bias (HWIO)
    bn_gamma = jnp.ones((Cmid,), jnp.float32)
    bn_beta = jnp.zeros((Cmid,), jnp.float32)
    bn_mean = jnp.zeros((Cmid,), jnp.float32)
    bn_var = jnp.ones((Cmid,), jnp.float32)
    w2 = 0.1 * jax.random.normal(k[2], (Cmid, Cout), jnp.float32)        # conv1x1
    b2 = 0.1 * jax.random.normal(k[3], (Cout,), jnp.float32)             # conv1x1 bias

    out = scale_prediction_pallas(x, w1, bn_gamma, bn_beta, bn_mean, bn_var,
                                  w2, b2, num_classes)
    out = jax.block_until_ready(out)

    ref = _reference_jax(x, w1, bn_gamma, bn_beta, bn_mean, bn_var, w2, b2,
                         num_classes)
    assert out.shape == (B, 3, H, W, num_classes + 5), out.shape
    max_err = float(jnp.max(jnp.abs(out - ref)))
    # bf16 MXU inputs (+ bf16 epilogue on v6e/v7x) vs the pure-f32 reference.
    assert jnp.allclose(out, ref, atol=3e-2, rtol=3e-2), max_err

    print("KERNEL_OK")
</pallas_src>

<mosaic_0001>
module attributes {stable_mosaic.version = 11 : i64} {
  func.func @_scale_pred_kernel(%arg0: i32, %arg1: i32, %arg2: memref<1x1x10x18x4xbf16, #tpu.memory_space<vmem>>, %arg3: memref<9x4x128xbf16, #tpu.memory_space<vmem>>, %arg4: memref<1x128xf32, #tpu.memory_space<vmem>>, %arg5: memref<128x128xbf16, #tpu.memory_space<vmem>>, %arg6: memref<1x128xf32, #tpu.memory_space<vmem>>, %arg7: memref<1x8x16x128xf32, #tpu.memory_space<vmem>>) attributes {dimension_semantics = [#tpu.dimension_semantics<parallel>, #tpu.dimension_semantics<parallel>], iteration_bounds = array<i64: 2, 2>, scalar_prefetch = 0 : i64, scratch_operands = 0 : i64, tpu.core_type = #tpu.core_type<tc>, window_params = [{transform_indices = @transform_0, window_bounds = array<i64: 1, 1, 10, 18, 4>}, {pipeline_mode = #tpu.pipeline_mode<synchronous>, transform_indices = @transform_1, window_bounds = array<i64: 9, 4, 128>}, {pipeline_mode = #tpu.pipeline_mode<synchronous>, transform_indices = @transform_2, window_bounds = array<i64: 1, 128>}, {pipeline_mode = #tpu.pipeline_mode<synchronous>, transform_indices = @transform_3, window_bounds = array<i64: 128, 128>}, {pipeline_mode = #tpu.pipeline_mode<synchronous>, transform_indices = @transform_4, window_bounds = array<i64: 1, 128>}, {transform_indices = @transform_5, window_bounds = array<i64: 1, 8, 16, 128>}]} {
    %c0 = arith.constant 0 : index
    %c0_0 = arith.constant 0 : index
    %c0_1 = arith.constant 0 : index
    %c0_2 = arith.constant 0 : index
    %c0_3 = arith.constant 0 : index
    %0 = vector.load %arg2[%c0, %c0_0, %c0_1, %c0_2, %c0_3] : memref<1x1x10x18x4xbf16, #tpu.memory_space<vmem>>, vector<1x1x10x18x4xbf16>
    %1 = vector.shape_cast %0 : vector<1x1x10x18x4xbf16> to vector<10x18x4xbf16>
    %2 = vector.extract_strided_slice %1 {offsets = [0, 0, 0], sizes = [8, 16, 4], strides = [1, 1, 1]} : vector<10x18x4xbf16> to vector<8x16x4xbf16>
    %3 = vector.shape_cast %2 : vector<8x16x4xbf16> to vector<128x4xbf16>
    %c0_4 = arith.constant 0 : index
    %c0_5 = arith.constant 0 : index
    %c0_6 = arith.constant 0 : index
    %4 = vector.load %arg3[%c0_4, %c0_5, %c0_6] : memref<9x4x128xbf16, #tpu.memory_space<vmem>>, vector<1x4x128xbf16>
    %5 = vector.shape_cast %4 : vector<1x4x128xbf16> to vector<4x128xbf16>
    %cst = arith.constant dense<0.000000e+00> : vector<128x128xf32>
    %6 = tpu.matmul %3, %5, %cst {dimension_numbers = #tpu.dot_dimension_numbers<[1], [0], [0], [1], [0, 0, 1, 1], [], []>} : vector<128x4xbf16>, vector<4x128xbf16>, vector<128x128xf32> -> vector<128x128xf32>
    %7 = vector.extract_strided_slice %1 {offsets = [0, 1, 0], sizes = [8, 16, 4], strides = [1, 1, 1]} : vector<10x18x4xbf16> to vector<8x16x4xbf16>
    %8 = vector.shape_cast %7 : vector<8x16x4xbf16> to vector<128x4xbf16>
    %c1 = arith.constant 1 : index
    %c0_7 = arith.constant 0 : index
    %c0_8 = arith.constant 0 : index
    %9 = vector.load %arg3[%c1, %c0_7, %c0_8] : memref<9x4x128xbf16, #tpu.memory_space<vmem>>, vector<1x4x128xbf16>
    %10 = vector.shape_cast %9 : vector<1x4x128xbf16> to vector<4x128xbf16>
    %cst_9 = arith.constant dense<0.000000e+00> : vector<128x128xf32>
    %11 = tpu.matmul %8, %10, %cst_9 {dimension_numbers = #tpu.dot_dimension_numbers<[1], [0], [0], [1], [0, 0, 1, 1], [], []>} : vector<128x4xbf16>, vector<4x128xbf16>, vector<128x128xf32> -> vector<128x128xf32>
    %12 = arith.addf %6, %11 : vector<128x128xf32>
    %13 = vector.extract_strided_slice %1 {offsets = [0, 2, 0], sizes = [8, 16, 4], strides = [1, 1, 1]} : vector<10x18x4xbf16> to vector<8x16x4xbf16>
    %14 = vector.shape_cast %13 : vector<8x16x4xbf16> to vector<128x4xbf16>
    %c2 = arith.constant 2 : index
    %c0_10 = arith.constant 0 : index
    %c0_11 = arith.constant 0 : index
    %15 = vector.load %arg3[%c2, %c0_10, %c0_11] : memref<9x4x128xbf16, #tpu.memory_space<vmem>>, vector<1x4x128xbf16>
    %16 = vector.shape_cast %15 : vector<1x4x128xbf16> to vector<4x128xbf16>
    %cst_12 = arith.constant dense<0.000000e+00> : vector<128x128xf32>
    %17 = tpu.matmul %14, %16, %cst_12 {dimension_numbers = #tpu.dot_dimension_numbers<[1], [0], [0], [1], [0, 0, 1, 1], [], []>} : vector<128x4xbf16>, vector<4x128xbf16>, vector<128x128xf32> -> vector<128x128xf32>
    %18 = arith.addf %12, %17 : vector<128x128xf32>
    %19 = vector.extract_strided_slice %1 {offsets = [1, 0, 0], sizes = [8, 16, 4], strides = [1, 1, 1]} : vector<10x18x4xbf16> to vector<8x16x4xbf16>
    %20 = vector.shape_cast %19 : vector<8x16x4xbf16> to vector<128x4xbf16>
    %c3 = arith.constant 3 : index
    %c0_13 = arith.constant 0 : index
    %c0_14 = arith.constant 0 : index
    %21 = vector.load %arg3[%c3, %c0_13, %c0_14] : memref<9x4x128xbf16, #tpu.memory_space<vmem>>, vector<1x4x128xbf16>
    %22 = vector.shape_cast %21 : vector<1x4x128xbf16> to vector<4x128xbf16>
    %cst_15 = arith.constant dense<0.000000e+00> : vector<128x128xf32>
    %23 = tpu.matmul %20, %22, %cst_15 {dimension_numbers = #tpu.dot_dimension_numbers<[1], [0], [0], [1], [0, 0, 1, 1], [], []>} : vector<128x4xbf16>, vector<4x128xbf16>, vector<128x128xf32> -> vector<128x128xf32>
    %24 = arith.addf %18, %23 : vector<128x128xf32>
    %25 = vector.extract_strided_slice %1 {offsets = [1, 1, 0], sizes = [8, 16, 4], strides = [1, 1, 1]} : vector<10x18x4xbf16> to vector<8x16x4xbf16>
    %26 = vector.shape_cast %25 : vector<8x16x4xbf16> to vector<128x4xbf16>
    %c4 = arith.constant 4 : index
    %c0_16 = arith.constant 0 : index
    %c0_17 = arith.constant 0 : index
    %27 = vector.load %arg3[%c4, %c0_16, %c0_17] : memref<9x4x128xbf16, #tpu.memory_space<vmem>>, vector<1x4x128xbf16>
    %28 = vector.shape_cast %27 : vector<1x4x128xbf16> to vector<4x128xbf16>
    %cst_18 = arith.constant dense<0.000000e+00> : vector<128x128xf32>
    %29 = tpu.matmul %26, %28, %cst_18 {dimension_numbers = #tpu.dot_dimension_numbers<[1], [0], [0], [1], [0, 0, 1, 1], [], []>} : vector<128x4xbf16>, vector<4x128xbf16>, vector<128x128xf32> -> vector<128x128xf32>
    %30 = arith.addf %24, %29 : vector<128x128xf32>
    %31 = vector.extract_strided_slice %1 {offsets = [1, 2, 0], sizes = [8, 16, 4], strides = [1, 1, 1]} : vector<10x18x4xbf16> to vector<8x16x4xbf16>
    %32 = vector.shape_cast %31 : vector<8x16x4xbf16> to vector<128x4xbf16>
    %c5 = arith.constant 5 : index
    %c0_19 = arith.constant 0 : index
    %c0_20 = arith.constant 0 : index
    %33 = vector.load %arg3[%c5, %c0_19, %c0_20] : memref<9x4x128xbf16, #tpu.memory_space<vmem>>, vector<1x4x128xbf16>
    %34 = vector.shape_cast %33 : vector<1x4x128xbf16> to vector<4x128xbf16>
    %cst_21 = arith.constant dense<0.000000e+00> : vector<128x128xf32>
    %35 = tpu.matmul %32, %34, %cst_21 {dimension_numbers = #tpu.dot_dimension_numbers<[1], [0], [0], [1], [0, 0, 1, 1], [], []>} : vector<128x4xbf16>, vector<4x128xbf16>, vector<128x128xf32> -> vector<128x128xf32>
    %36 = arith.addf %30, %35 : vector<128x128xf32>
    %37 = vector.extract_strided_slice %1 {offsets = [2, 0, 0], sizes = [8, 16, 4], strides = [1, 1, 1]} : vector<10x18x4xbf16> to vector<8x16x4xbf16>
    %38 = vector.shape_cast %37 : vector<8x16x4xbf16> to vector<128x4xbf16>
    %c6 = arith.constant 6 : index
    %c0_22 = arith.constant 0 : index
    %c0_23 = arith.constant 0 : index
    %39 = vector.load %arg3[%c6, %c0_22, %c0_23] : memref<9x4x128xbf16, #tpu.memory_space<vmem>>, vector<1x4x128xbf16>
    %40 = vector.shape_cast %39 : vector<1x4x128xbf16> to vector<4x128xbf16>
    %cst_24 = arith.constant dense<0.000000e+00> : vector<128x128xf32>
    %41 = tpu.matmul %38, %40, %cst_24 {dimension_numbers = #tpu.dot_dimension_numbers<[1], [0], [0], [1], [0, 0, 1, 1], [], []>} : vector<128x4xbf16>, vector<4x128xbf16>, vector<128x128xf32> -> vector<128x128xf32>
    %42 = arith.addf %36, %41 : vector<128x128xf32>
    %43 = vector.extract_strided_slice %1 {offsets = [2, 1, 0], sizes = [8, 16, 4], strides = [1, 1, 1]} : vector<10x18x4xbf16> to vector<8x16x4xbf16>
    %44 = vector.shape_cast %43 : vector<8x16x4xbf16> to vector<128x4xbf16>
    %c7 = arith.constant 7 : index
    %c0_25 = arith.constant 0 : index
    %c0_26 = arith.constant 0 : index
    %45 = vector.load %arg3[%c7, %c0_25, %c0_26] : memref<9x4x128xbf16, #tpu.memory_space<vmem>>, vector<1x4x128xbf16>
    %46 = vector.shape_cast %45 : vector<1x4x128xbf16> to vector<4x128xbf16>
    %cst_27 = arith.constant dense<0.000000e+00> : vector<128x128xf32>
    %47 = tpu.matmul %44, %46, %cst_27 {dimension_numbers = #tpu.dot_dimension_numbers<[1], [0], [0], [1], [0, 0, 1, 1], [], []>} : vector<128x4xbf16>, vector<4x128xbf16>, vector<128x128xf32> -> vector<128x128xf32>
    %48 = arith.addf %42, %47 : vector<128x128xf32>
    %49 = vector.extract_strided_slice %1 {offsets = [2, 2, 0], sizes = [8, 16, 4], strides = [1, 1, 1]} : vector<10x18x4xbf16> to vector<8x16x4xbf16>
    %50 = vector.shape_cast %49 : vector<8x16x4xbf16> to vector<128x4xbf16>
    %c8 = arith.constant 8 : index
    %c0_28 = arith.constant 0 : index
    %c0_29 = arith.constant 0 : index
    %51 = vector.load %arg3[%c8, %c0_28, %c0_29] : memref<9x4x128xbf16, #tpu.memory_space<vmem>>, vector<1x4x128xbf16>
    %52 = vector.shape_cast %51 : vector<1x4x128xbf16> to vector<4x128xbf16>
    %cst_30 = arith.constant dense<0.000000e+00> : vector<128x128xf32>
    %53 = tpu.matmul %50, %52, %cst_30 {dimension_numbers = #tpu.dot_dimension_numbers<[1], [0], [0], [1], [0, 0, 1, 1], [], []>} : vector<128x4xbf16>, vector<4x128xbf16>, vector<128x128xf32> -> vector<128x128xf32>
    %54 = arith.addf %48, %53 : vector<128x128xf32>
    %c0_31 = arith.constant 0 : index
    %c0_32 = arith.constant 0 : index
    %55 = vector.load %arg4[%c0_31, %c0_32] : memref<1x128xf32, #tpu.memory_space<vmem>>, vector<1x128xf32>
    %56 = vector.broadcast %55 : vector<1x128xf32> to vector<128x128xf32>
    %57 = arith.addf %54, %56 : vector<128x128xf32>
    %cst_33 = arith.constant 0.000000e+00 : f32
    %58 = vector.broadcast %cst_33 : f32 to vector<128x128xf32>
    %59 = arith.cmpf ogt, %57, %58 : vector<128x128xf32>
    %cst_34 = arith.constant 1.000000e-01 : f32
    %60 = vector.broadcast %cst_34 : f32 to vector<128x128xf32>
    %61 = arith.mulf %60, %57 : vector<128x128xf32>
    %62 = arith.select %59, %57, %61 : vector<128x128xi1>, vector<128x128xf32>
    %63 = arith.truncf %62 : vector<128x128xf32> to vector<128x128xbf16>
    %c0_35 = arith.constant 0 : index
    %c0_36 = arith.constant 0 : index
    %64 = vector.load %arg5[%c0_35, %c0_36] : memref<128x128xbf16, #tpu.memory_space<vmem>>, vector<128x128xbf16>
    %cst_37 = arith.constant dense<0.000000e+00> : vector<128x128xf32>
    %65 = tpu.matmul %63, %64, %cst_37 {dimension_numbers = #tpu.dot_dimension_numbers<[1], [0], [0], [1], [0, 0, 1, 1], [], []>} : vector<128x128xbf16>, vector<128x128xbf16>, vector<128x128xf32> -> vector<128x128xf32>
    %c0_38 = arith.constant 0 : index
    %c0_39 = arith.constant 0 : index
    %66 = vector.load %arg6[%c0_38, %c0_39] : memref<1x128xf32, #tpu.memory_space<vmem>>, vector<1x128xf32>
    %67 = vector.broadcast %66 : vector<1x128xf32> to vector<128x128xf32>
    %68 = arith.addf %65, %67 : vector<128x128xf32>
    %69 = vector.shape_cast %68 : vector<128x128xf32> to vector<8x16x128xf32>
    %c0_40 = arith.constant 0 : index
    %c0_41 = arith.constant 0 : index
    %c0_42 = arith.constant 0 : index
    %c0_43 = arith.constant 0 : index
    %70 = vector.load %arg7[%c0_40, %c0_41, %c0_42, %c0_43] : memref<1x8x16x128xf32, #tpu.memory_space<vmem>>, vector<1x8x16x128xf32>
    %71 = vector.shape_cast %70 : vector<1x8x16x128xf32> to vector<8x16x128xf32>
    %72 = vector.shape_cast %69 : vector<8x16x128xf32> to vector<1x8x16x128xf32>
    tpu.vector_store %arg7[%c0_40, %c0_41, %c0_42, %c0_43], %72 {strides = array<i32>} : memref<1x8x16x128xf32, #tpu.memory_space<vmem>>, vector<1x8x16x128xf32>,
    return
  }
  func.func @transform_0(%arg0: i32, %arg1: i32) -> (i32, i32, i32, i32, i32) {
    %c0_i32 = arith.constant 0 : i32
    %c0_i32_0 = arith.constant 0 : i32
    %c0_i32_1 = arith.constant 0 : i32
    %c0_i32_2 = arith.constant 0 : i32
    return %arg0, %arg1, %c0_i32, %c0_i32_0, %c0_i32_1 : i32, i32, i32, i32, i32
  }
  func.func @transform_1(%arg0: i32, %arg1: i32) -> (i32, i32, i32) {
    %c0_i32 = arith.constant 0 : i32
    %c0_i32_0 = arith.constant 0 : i32
    %c0_i32_1 = arith.constant 0 : i32
    %c0_i32_2 = arith.constant 0 : i32
    return %c0_i32, %c0_i32_0, %c0_i32_1 : i32, i32, i32
  }
  func.func @transform_2(%arg0: i32, %arg1: i32) -> (i32, i32) {
    %c0_i32 = arith.constant 0 : i32
    %c0_i32_0 = arith.constant 0 : i32
    %c0_i32_1 = arith.constant 0 : i32
    return %c0_i32, %c0_i32_0 : i32, i32
  }
  func.func @transform_3(%arg0: i32, %arg1: i32) -> (i32, i32) {
    %c0_i32 = arith.constant 0 : i32
    %c0_i32_0 = arith.constant 0 : i32
    %c0_i32_1 = arith.constant 0 : i32
    return %c0_i32, %c0_i32_0 : i32, i32
  }
  func.func @transform_4(%arg0: i32, %arg1: i32) -> (i32, i32) {
    %c0_i32 = arith.constant 0 : i32
    %c0_i32_0 = arith.constant 0 : i32
    %c0_i32_1 = arith.constant 0 : i32
    return %c0_i32, %c0_i32_0 : i32, i32
  }
  func.func @transform_5(%arg0: i32, %arg1: i32) -> (i32, i32, i32, i32) {
    %c0_i32 = arith.constant 0 : i32
    %c0_i32_0 = arith.constant 0 : i32
    %c0_i32_1 = arith.constant 0 : i32
    return %arg0, %arg1, %c0_i32, %c0_i32_0 : i32, i32, i32, i32
  }
}

</mosaic_0001>

<llo_original>
// kernel: tpu_custom_call.1
$region0: #{tpu_custom_call.1}
  #allocation0 [shape = 'u32[]', space=smem, size = 0x4, offset = 0x4, fixed_abs, tag = 'smem constant byte address 0x4 - core index']
  #allocation1 [shape = 'u32[144,128]{1,0:T(1,128)}', space=vmem, size = 0x12000, scoped, tag = 'internal scratch']
  %s0 = inlined_call_operand.vmem [shape: bf16[2,2,10,18,4], index: 0, kind: input, shape index: {}]
  %s1 = inlined_call_operand.vmem [shape: bf16[9,4,128], index: 1, kind: input, shape index: {}]
  %s2 = inlined_call_operand.vmem [shape: f32[1,128], index: 2, kind: input, shape index: {}]
  %s3 = inlined_call_operand.vmem [shape: bf16[128,128], index: 3, kind: input, shape index: {}]
  %s4 = inlined_call_operand.vmem [shape: f32[1,128], index: 4, kind: input, shape index: {}]
  %s5 = inlined_call_operand.hbm [shape: f32[2,16,16,128], index: 5, kind: output, shape index: {}]
  %s6 = sld [smem:[#allocation0]]
  $region53: #{tpu_custom_call.1} parent=0
    _
  %s8 = ssub.s32 1, %s6
  %s9 = scalar_select 0, %s8, %s6
  $region1: #{tpu_custom_call.1} parent=0
    #allocation2 [shape = 'u8[131072]{0}', space=vmem, size = 0x20000, scoped, tag = 'output window, operand 0']
    #allocation3 [shape = 's32[2]{0}', space=sflag, size = 0x8, scoped, tag = 'scoped memory for tpu_custom_call.1']
    %10 = vsyncpa [#allocation3], 0
    %s11 = scalar_lea.sflag [#allocation3], 1
    %12 = vsyncpa %s11, 0
    loop: start=0, step=1, limit=6
    $region2: #{tpu_custom_call.1} parent=1 // loop_pre_header
      _
    $region3: #{tpu_custom_call.1} parent=1 // loop_header
      %s14 = sphi 0, %s18
      %p15 = scmp.ge.s32.totalorder %s14, 6
      %s21 = sphi 0, %s33
      %s22 = sphi 0, %s29
      %s23 = sphi 0, %s21
      %s24 = sphi 0, %s22
      %s25 = sphi 0, %s23
      %s26 = sphi 0, %s24
      %s38 = sphi 0, %s40
      %s41 = sphi 0, %s38
      %s42 = sphi 0, %s41
      %s58 = sphi 0, %s42
      %s62 = sphi 0, %s62
      %s64 = sphi 0, %s62
      %s65 = sphi 0, %s64
      %s79 = sphi 0, %s65
      %s83 = sphi 0, %s83
      %s85 = sphi 0, %s83
      %s86 = sphi 0, %s85
      %s100 = sphi 0, %s86
      %s104 = sphi 0, %s104
      %s106 = sphi 0, %s104
      %s107 = sphi 0, %s106
      %s121 = sphi 0, %s107
      %s125 = sphi 0, %s125
      %s127 = sphi 0, %s125
      %s128 = sphi 0, %s127
      %s142 = sphi 0, %s128
      %s150 = sphi 0, %s152
      %s153 = sphi 0, %s150
      %s154 = sphi 0, %s153
      %s170 = sphi 0, %s154
    $region4: #{tpu_custom_call.1} parent=1 // loop_header_branch
      %17 = sbr.rel (%p15) target = $region8
    $region5: #{tpu_custom_call.1} parent=1 // loop_body
      %s19 = ssub.s32 %s14, 1
      %s20 = ssub.s32 %s14, 2
      %s27 = sadd.s32 1, %s22
      %p28 = scmp.ge.s32.totalorder %s27, 2
      %s29 = scalar_select %p28, 0, %s27
      %s30 = sadd.s32 1, %s21
      %s31 = scalar_select %p28, %s30, %s21
      %p32 = scmp.ge.s32.totalorder %s31, 2
      %s33 = scalar_select %p32, 0, %s31
      %s34 = ssub.s32 %s21, %s33
      %s35 = ssub.s32 %s22, %s29
      %s36 = sor.u32 %s34, %s35
      %p37 = scmp.eq.s32.totalorder %s36, 0
      %s39 = sadd.s32 %s38, 1
      %s40 = scalar_select %p37, %s38, %s39
      %p43 = pneg %p37
      %p44 = scmp.eq.s32.totalorder %s14, 3
      %p45 = por %p43, %p44
      %p46 = scmp.ne.s32.totalorder %s38, %s41
      %p47 = scmp.eq.s32.totalorder %s14, 0
      %p48 = por %p46, %p47
      %p49 = scmp.ne.s32.totalorder %s38, %s41
      %p50 = scmp.eq.s32.totalorder %s19, 3
      %p51 = por %p49, %p50
      %p52 = scmp.ne.s32.totalorder %s41, %s42
      %p53 = scmp.eq.s32.totalorder %s19, 0
      %p54 = por %p52, %p53
      %p55 = scmp.ne.s32.totalorder %s41, %s42
      %p56 = scmp.eq.s32.totalorder %s20, 3
      %p57 = por %p55, %p56
      %p59 = scmp.ne.s32.totalorder %s42, %s58
      %p60 = scmp.eq.s32.totalorder %s20, 0
      %p61 = por %p59, %p60
      %s63 = sadd.s32 %s62, 1
      %p66 = scmp.eq.s32.totalorder %s14, 3
      %p67 = scmp.ne.s32.totalorder %s62, %s64
      %p68 = scmp.eq.s32.totalorder %s14, 0
      %p69 = por %p67, %p68
      %p70 = scmp.ne.s32.totalorder %s62, %s64
      %p71 = scmp.eq.s32.totalorder %s19, 3
      %p72 = por %p70, %p71
      %p73 = scmp.ne.s32.totalorder %s64, %s65
      %p74 = scmp.eq.s32.totalorder %s19, 0
      %p75 = por %p73, %p74
      %p76 = scmp.ne.s32.totalorder %s64, %s65
      %p77 = scmp.eq.s32.totalorder %s20, 3
      %p78 = por %p76, %p77
      %p80 = scmp.ne.s32.totalorder %s65, %s79
      %p81 = scmp.eq.s32.totalorder %s20, 0
      %p82 = por %p80, %p81
      %s84 = sadd.s32 %s83, 1
      %p87 = scmp.eq.s32.totalorder %s14, 3
      %p88 = scmp.ne.s32.totalorder %s83, %s85
      %p89 = scmp.eq.s32.totalorder %s14, 0
      %p90 = por %p88, %p89
      %p91 = scmp.ne.s32.totalorder %s83, %s85
      %p92 = scmp.eq.s32.totalorder %s19, 3
      %p93 = por %p91, %p92
      %p94 = scmp.ne.s32.totalorder %s85, %s86
      %p95 = scmp.eq.s32.totalorder %s19, 0
      %p96 = por %p94, %p95
      %p97 = scmp.ne.s32.totalorder %s85, %s86
      %p98 = scmp.eq.s32.totalorder %s20, 3
      %p99 = por %p97, %p98
      %p101 = scmp.ne.s32.totalorder %s86, %s100
      %p102 = scmp.eq.s32.totalorder %s20, 0
      %p103 = por %p101, %p102
      %s105 = sadd.s32 %s104, 1
      %p108 = scmp.eq.s32.totalorder %s14, 3
      %p109 = scmp.ne.s32.totalorder %s104, %s106
      %p110 = scmp.eq.s32.totalorder %s14, 0
      %p111 = por %p109, %p110
      %p112 = scmp.ne.s32.totalorder %s104, %s106
      %p113 = scmp.eq.s32.totalorder %s19, 3
      %p114 = por %p112, %p113
      %p115 = scmp.ne.s32.totalorder %s106, %s107
      %p116 = scmp.eq.s32.totalorder %s19, 0
      %p117 = por %p115, %p116
      %p118 = scmp.ne.s32.totalorder %s106, %s107
      %p119 = scmp.eq.s32.totalorder %s20, 3
      %p120 = por %p118, %p119
      %p122 = scmp.ne.s32.totalorder %s107, %s121
      %p123 = scmp.eq.s32.totalorder %s20, 0
      %p124 = por %p122, %p123
      %s126 = sadd.s32 %s125, 1
      %p129 = scmp.eq.s32.totalorder %s14, 3
      %p130 = scmp.ne.s32.totalorder %s125, %s127
      %p131 = scmp.eq.s32.totalorder %s14, 0
      %p132 = por %p130, %p131
      %p133 = scmp.ne.s32.totalorder %s125, %s127
      %p134 = scmp.eq.s32.totalorder %s19, 3
      %p135 = por %p133, %p134
      %p136 = scmp.ne.s32.totalorder %s127, %s128
      %p137 = scmp.eq.s32.totalorder %s19, 0
      %p138 = por %p136, %p137
      %p139 = scmp.ne.s32.totalorder %s127, %s128
      %p140 = scmp.eq.s32.totalorder %s20, 3
      %p141 = por %p139, %p140
      %p143 = scmp.ne.s32.totalorder %s128, %s142
      %p144 = scmp.eq.s32.totalorder %s20, 0
      %p145 = por %p143, %p144
      %s146 = ssub.s32 %s21, %s33
      %s147 = ssub.s32 %s22, %s29
      %s148 = sor.u32 %s146, %s147
      %p149 = scmp.eq.s32.totalorder %s148, 0
      %s151 = sadd.s32 %s150, 1
      %s152 = scalar_select %p149, %s150, %s151
      %p155 = pneg %p149
      %p156 = scmp.eq.s32.totalorder %s14, 3
      %p157 = por %p155, %p156
      %p158 = scmp.ne.s32.totalorder %s150, %s153
      %p159 = scmp.eq.s32.totalorder %s14, 0
      %p160 = por %p158, %p159
      %p161 = scmp.ne.s32.totalorder %s150, %s153
      %p162 = scmp.eq.s32.totalorder %s19, 3
      %p163 = por %p161, %p162
      %p164 = scmp.ne.s32.totalorder %s153, %s154
      %p165 = scmp.eq.s32.totalorder %s19, 0
      %p166 = por %p164, %p165
      %p167 = scmp.ne.s32.totalorder %s153, %s154
      %p168 = scmp.eq.s32.totalorder %s20, 3
      %p169 = por %p167, %p168
      %p171 = scmp.ne.s32.totalorder %s154, %s170
      %p172 = scmp.eq.s32.totalorder %s20, 0
      %p173 = por %p171, %p172
      %p174 = scmp.le.s32.totalorder 1, %s14
      %p175 = scmp.lt.s32.totalorder %s14, 5
      %p176 = pnand %p174, %p175
      %p177 = pneg %p176
      // Predicated region
      $region9: #{tpu_custom_call.1} parent=5 // pred_check
        _
      $region10: #{tpu_custom_call.1} parent=5 // pred_check_branch
        %179 = sbr.rel (%p176) target = $region12
      $region11: #{tpu_custom_call.1} parent=5 // pred_region
        %s180 = ssub.s32 %s14, 1
        // Predicated region
        $region13: #{tpu_custom_call.1} parent=11 // pred_check
          %p181 = pneg %p75
        $region14: #{tpu_custom_call.1} parent=11 // pred_check_branch
          %183 = sbr.rel (%p181) target = $region16
        $region15: #{tpu_custom_call.1} parent=11 // pred_region
          _
        $region16: #{tpu_custom_call.1} parent=11 // pred_fallthru
          _
        // Predicated region
        $region17: #{tpu_custom_call.1} parent=11 // pred_check
          %p184 = pneg %p96
        $region18: #{tpu_custom_call.1} parent=11 // pred_check_branch
          %186 = sbr.rel (%p184) target = $region20
        $region19: #{tpu_custom_call.1} parent=11 // pred_region
          _
        $region20: #{tpu_custom_call.1} parent=11 // pred_fallthru
          _
        // Predicated region
        $region21: #{tpu_custom_call.1} parent=11 // pred_check
          %p187 = pneg %p117
        $region22: #{tpu_custom_call.1} parent=11 // pred_check_branch
          %189 = sbr.rel (%p187) target = $region24
        $region23: #{tpu_custom_call.1} parent=11 // pred_region
          _
        $region24: #{tpu_custom_call.1} parent=11 // pred_fallthru
          _
        // Predicated region
        $region25: #{tpu_custom_call.1} parent=11 // pred_check
          %p190 = pneg %p138
        $region26: #{tpu_custom_call.1} parent=11 // pred_check_branch
          %192 = sbr.rel (%p190) target = $region28
        $region27: #{tpu_custom_call.1} parent=11 // pred_region
          _
        $region28: #{tpu_custom_call.1} parent=11 // pred_fallthru
          _
      $region12: #{tpu_custom_call.1} parent=5 // pred_fallthru
        _
      %p193 = scmp.lt.s32.totalorder %s14, 4
      // Predicated region
      $region29: #{tpu_custom_call.1} parent=5 // pred_check
        %p194 = pneg %p193
      $region30: #{tpu_custom_call.1} parent=5 // pred_check_branch
        %196 = sbr.rel (%p194) target = $region32
      $region31: #{tpu_custom_call.1} parent=5 // pred_region
        // Predicated region
        $region33: #{tpu_custom_call.1} parent=31 // pred_check
          %p197 = pneg %p48
        $region34: #{tpu_custom_call.1} parent=31 // pred_check_branch
          %199 = sbr.rel (%p197) target = $region36
        $region35: #{tpu_custom_call.1} parent=31 // pred_region
          %p200 = scmp.lt.s32.totalorder %s21, 1
          %s201 = scalar_select %p200, %s21, 1
          %p202 = scmp.lt.s32.totalorder %s22, 1
          %s203 = scalar_select %p202, %s22, 1
          %s204 = smul.addr %s203, 30
          %s205 = smul.addr %s201, 60
          %s206 = sadd.s32 %s204, %s205
          %s207 = smul.addr %s206, 4
          %s208 = scalar_lea.vmem %s0, %s207
        $region36: #{tpu_custom_call.1} parent=31 // pred_fallthru
          _
      $region32: #{tpu_custom_call.1} parent=5 // pred_fallthru
        _
      %p209 = scmp.le.s32.totalorder 1, %s14
      %p210 = scmp.lt.s32.totalorder %s14, 5
      %p211 = pnand %p209, %p210
      %p212 = pneg %p211
      // Predicated region
      $region37: #{tpu_custom_call.1} parent=5 // pred_check
        _
      $region38: #{tpu_custom_call.1} parent=5 // pred_check_branch
        %214 = sbr.rel (%p211) target = $region40
      $region39: #{tpu_custom_call.1} parent=5 // pred_region
        %s215 = ssub.s32 %s14, 1
        %p216 = scmp.lt.s32.totalorder %s23, 1
        %s217 = scalar_select %p216, %s23, 1
        %p218 = scmp.lt.s32.totalorder %s24, 1
        %s219 = scalar_select %p218, %s24, 1
        %s220 = smul.addr %s219, 30
        %s221 = smul.addr %s217, 60
        %s222 = sadd.s32 %s220, %s221
        %s223 = smul.addr %s222, 4
        %s224 = scalar_lea.vmem %s0, %s223
        %p225 = pneg %p54
        %p226 = pneg %p51
        %p227 = pneg %p75
        %p228 = pneg %p72
        %p229 = pneg %p96
        %p230 = pneg %p93
        %p231 = pneg %p117
        %p232 = pneg %p114
        %p233 = pneg %p138
        %p234 = pneg %p135
        %p235 = pneg %p166
        %p236 = pneg %p163
        %s237 = sand.u32 %s153, 1
        %s238 = scalar_lea.sflag [#allocation3], %s237
        %s239 = sand.u32 %s153, 1
        %s240 = smul.addr %s239, 128
        %s241 = scalar_lea.vmem [#allocation2], %s240
        %p242 = scmp.lt.s32.totalorder %s23, 1
        %s243 = scalar_select %p242, %s23, 1
        %p244 = scmp.lt.s32.totalorder %s24, 1
        %s245 = scalar_select %p244, %s24, 1
        %s246 = smul.addr %s245, 30
        %s247 = smul.addr %s243, 60
        %s248 = sadd.s32 %s246, %s247
        %s249 = smul.addr %s248, 4
        %s250 = scalar_lea.vmem %s0, %s249
        %s251 = smul.u32 8, %s24
        %v253 = vld [vmem:[%s250] sm:$0xf]
        %v254 = vld [vmem:[%s250 + $0x4] sm:$0xf]
        %v255 = vld [vmem:[%s250 + $0x8] sm:$0x1]
        %v256 = vld [vmem:[%s250 + $0xc] sm:$0xf]
        %v257 = vld [vmem:[%s250 + $0x10] sm:$0xf]
        %v258 = vld [vmem:[%s250 + $0x14] sm:$0x1]
        %v259 = vld [vmem:[%s250 + $0x18] sm:$0xf]
        %v260 = vld [vmem:[%s250 + $0x1c] sm:$0xf]
        %v261 = vld [vmem:[%s250 + $0x20] sm:$0x1]
        %v262 = vld [vmem:[%s250 + $0x24] sm:$0xf]
        %v263 = vld [vmem:[%s250 + $0x28] sm:$0xf]
        %v264 = vld [vmem:[%s250 + $0x2c] sm:$0x1]
        %v265 = vld [vmem:[%s250 + $0x30] sm:$0xf]
        %v266 = vld [vmem:[%s250 + $0x34] sm:$0xf]
        %v267 = vld [vmem:[%s250 + $0x38] sm:$0x1]
        %v268 = vld [vmem:[%s250 + $0x3c] sm:$0xf]
        %v269 = vld [vmem:[%s250 + $0x40] sm:$0xf]
        %v270 = vld [vmem:[%s250 + $0x44] sm:$0x1]
        %v271 = vld [vmem:[%s250 + $0x48] sm:$0xf]
        %v272 = vld [vmem:[%s250 + $0x4c] sm:$0xf]
        %v273 = vld [vmem:[%s250 + $0x50] sm:$0x1]
        %v274 = vld [vmem:[%s250 + $0x54] sm:$0xf]
        %v275 = vld [vmem:[%s250 + $0x58] sm:$0xf]
        %v276 = vld [vmem:[%s250 + $0x5c] sm:$0x1]
        %v277 = vld [vmem:[%s250 + $0x60] sm:$0xf]
        %v278 = vld [vmem:[%s250 + $0x64] sm:$0xf]
        %v279 = vld [vmem:[%s250 + $0x68] sm:$0x1]
        %v280 = vld [vmem:[%s250 + $0x6c] sm:$0xf]
        %v281 = vld [vmem:[%s250 + $0x70] sm:$0xf]
        %v282 = vld [vmem:[%s250 + $0x74] sm:$0x1]
        %v283 = vld [vmem:[%s1] sm:$0x3]
        %vm284 = vsmask.f32 3328
        %vm285 = vsmask.f32 7440
        %vm286 = vmor %vm284, %vm285
        %v288 = vshrl.u32 %v253, 16
        %v290 = vrot.slane %v288, 4
        %v291 = vshll.u32 %v253, 16
        %v293 = vrot.slane %v291, 5
        %v294 = vor.u32 %v290, %v293
        %v295 = vrot.slane %v294, 4
        %v297 = vshll.u32 %v254, 16
        %v299 = vrot.slane %v297, 5
        %v300 = vsel %vm286, %v295, %v299
        %v301 = vshrl.u32 %v254, 16
        %v303 = vrot.slane %v301, 4
        %v304 = vor.u32 %v303, %v299
        %v305 = vrot.slane %v304, 4
        %v307 = vshll.u32 %v255, 16
        %v309 = vrot.slane %v307, 5
        %v310 = vsel %vm286, %v305, %v309
        %v312 = vshrl.u32 %v256, 16
        %v314 = vrot.slane %v312, 4
        %v315 = vshll.u32 %v256, 16
        %v317 = vrot.slane %v315, 5
        %v318 = vor.u32 %v314, %v317
        %v319 = vrot.slane %v318, 4
        %v321 = vshll.u32 %v257, 16
        %v323 = vrot.slane %v321, 5
        %v324 = vsel %vm286, %v319, %v323
        %v325 = vshrl.u32 %v257, 16
        %v327 = vrot.slane %v325, 4
        %v328 = vor.u32 %v327, %v323
        %v329 = vrot.slane %v328, 4
        %v331 = vshll.u32 %v258, 16
        %v333 = vrot.slane %v331, 5
        %v334 = vsel %vm286, %v329, %v333
        %v336 = vshrl.u32 %v259, 16
        %v338 = vrot.slane %v336, 4
        %v339 = vshll.u32 %v259, 16
        %v341 = vrot.slane %v339, 5
        %v342 = vor.u32 %v338, %v341
        %v343 = vrot.slane %v342, 4
        %v345 = vshll.u32 %v260, 16
        %v347 = vrot.slane %v345, 5
        %v348 = vsel %vm286, %v343, %v347
        %v349 = vshrl.u32 %v260, 16
        %v351 = vrot.slane %v349, 4
        %v352 = vor.u32 %v351, %v347
        %v353 = vrot.slane %v352, 4
        %v355 = vshll.u32 %v261, 16
        %v357 = vrot.slane %v355, 5
        %v358 = vsel %vm286, %v353, %v357
        %v360 = vshrl.u32 %v262, 16
        %v362 = vrot.slane %v360, 4
        %v363 = vshll.u32 %v262, 16
        %v365 = vrot.slane %v363, 5
        %v366 = vor.u32 %v362, %v365
        %v367 = vrot.slane %v366, 4
        %v369 = vshll.u32 %v263, 16
        %v371 = vrot.slane %v369, 5
        %v372 = vsel %vm286, %v367, %v371
        %v373 = vshrl.u32 %v263, 16
        %v375 = vrot.slane %v373, 4
        %v376 = vor.u32 %v375, %v371
        %v377 = vrot.slane %v376, 4
        %v379 = vshll.u32 %v264, 16
        %v381 = vrot.slane %v379, 5
        %v382 = vsel %vm286, %v377, %v381
        %v384 = vshrl.u32 %v265, 16
        %v386 = vrot.slane %v384, 4
        %v387 = vshll.u32 %v265, 16
        %v389 = vrot.slane %v387, 5
        %v390 = vor.u32 %v386, %v389
        %v391 = vrot.slane %v390, 4
        %v393 = vshll.u32 %v266, 16
        %v395 = vrot.slane %v393, 5
        %v396 = vsel %vm286, %v391, %v395
        %v397 = vshrl.u32 %v266, 16
        %v399 = vrot.slane %v397, 4
        %v400 = vor.u32 %v399, %v395
        %v401 = vrot.slane %v400, 4
        %v403 = vshll.u32 %v267, 16
        %v405 = vrot.slane %v403, 5
        %v406 = vsel %vm286, %v401, %v405
        %v408 = vshrl.u32 %v268, 16
        %v410 = vrot.slane %v408, 4
        %v411 = vshll.u32 %v268, 16
        %v413 = vrot.slane %v411, 5
        %v414 = vor.u32 %v410, %v413
        %v415 = vrot.slane %v414, 4
        %v417 = vshll.u32 %v269, 16
        %v419 = vrot.slane %v417, 5
        %v420 = vsel %vm286, %v415, %v419
        %v421 = vshrl.u32 %v269, 16
        %v423 = vrot.slane %v421, 4
        %v424 = vor.u32 %v423, %v419
        %v425 = vrot.slane %v424, 4
        %v427 = vshll.u32 %v270, 16
        %v429 = vrot.slane %v427, 5
        %v430 = vsel %vm286, %v425, %v429
        %v432 = vshrl.u32 %v271, 16
        %v434 = vrot.slane %v432, 4
        %v435 = vshll.u32 %v271, 16
        %v437 = vrot.slane %v435, 5
        %v438 = vor.u32 %v434, %v437
        %v439 = vrot.slane %v438, 4
        %v441 = vshll.u32 %v272, 16
        %v443 = vrot.slane %v441, 5
        %v444 = vsel %vm286, %v439, %v443
        %v445 = vshrl.u32 %v272, 16
        %v447 = vrot.slane %v445, 4
        %v448 = vor.u32 %v447, %v443
        %v449 = vrot.slane %v448, 4
        %v451 = vshll.u32 %v273, 16
        %v453 = vrot.slane %v451, 5
        %v454 = vsel %vm286, %v449, %v453
        %v456 = vshrl.u32 %v274, 16
        %v458 = vrot.slane %v456, 4
        %v459 = vshll.u32 %v274, 16
        %v461 = vrot.slane %v459, 5
        %v462 = vor.u32 %v458, %v461
        %v463 = vrot.slane %v462, 4
        %v465 = vshll.u32 %v275, 16
        %v467 = vrot.slane %v465, 5
        %v468 = vsel %vm286, %v463, %v467
        %v469 = vshrl.u32 %v275, 16
        %v471 = vrot.slane %v469, 4
        %v472 = vor.u32 %v471, %v467
        %v473 = vrot.slane %v472, 4
        %v475 = vshll.u32 %v276, 16
        %v477 = vrot.slane %v475, 5
        %v478 = vsel %vm286, %v473, %v477
        %s479 = scalar_lea.vmem %s1, 2
        %v480 = vld [vmem:[%s479] sm:$0x3]
        %v481 = vunpack.c.l.b16 %v300
        %v482 = vunpack.c.l.b16 %v310
        %v483 = vunpack.c.l.b16 %v324
        %v484 = vunpack.c.l.b16 %v334
        %v485 = vunpack.c.l.b16 %v348
        %v486 = vunpack.c.l.b16 %v358
        %v487 = vunpack.c.l.b16 %v372
        %v488 = vunpack.c.l.b16 %v382
        %v489 = vunpack.c.l.b16 %v396
        %v490 = vunpack.c.l.b16 %v406
        %v491 = vunpack.c.l.b16 %v420
        %v492 = vunpack.c.l.b16 %v430
        %v493 = vunpack.c.l.b16 %v444
        %v494 = vunpack.c.l.b16 %v454
        %v495 = vunpack.c.l.b16 %v468
        %v496 = vunpack.c.l.b16 %v478
        %v497 = vpack.c.b16 %v482, %v481
        %v498 = vpack.c.b16 %v484, %v483
        %v499 = vpack.c.b16 %v486, %v485
        %v500 = vpack.c.b16 %v488, %v487
        %v501 = vpack.c.b16 %v490, %v489
        %v502 = vpack.c.b16 %v492, %v491
        %v503 = vpack.c.b16 %v494, %v493
        %v504 = vpack.c.b16 %v496, %v495
        %vm505 = vcmask 31744
        %v507 = vsel %vm505, %v497, 0
        %v510 = vsel %vm505, %v498, 0
        %v513 = vsel %vm505, %v499, 0
        %v516 = vsel %vm505, %v500, 0
        %v519 = vsel %vm505, %v501, 0
        %v522 = vsel %vm505, %v502, 0
        %v525 = vsel %vm505, %v503, 0
        %v528 = vsel %vm505, %v504, 0
        %vm530 = vcmask 1041408
        %v532 = vsel %vm530, %v480, 0
        %534 = vmatprep.subr.bf16.mxu0 0
        %535 = vmatpush1.bf16.msra.mxu0 %v532
        %536 = vmatprep.subr.bf16.mxu0 0
        %537 = vmatpush1.bf16.msra.mxu0 0
        %538 = vmatprep.subr.bf16.mxu0 0
        %539 = vmatpush1.bf16.msra.mxu0 0
        %540 = vmatprep.subr.bf16.mxu0 0
        %541 = vmatpush1.bf16.msra.mxu0 0
        %542 = vmatprep.subr.bf16.mxu0 0
        %543 = vmatpush1.bf16.msra.mxu0 0
        %544 = vmatprep.subr.bf16.mxu0 0
        %545 = vmatpush1.bf16.msra.mxu0 0
        %546 = vmatprep.subr.bf16.mxu0 0
        %547 = vmatpush1.bf16.msra.mxu0 0
        %548 = vmatprep.subr.bf16.mxu0 0
        %549 = vmatpush1.bf16.msra.mxu0 0
        %550 = vmatprep.subr.bf16.mxu0 0
        %551 = vmatpush1.bf16.msra.mxu0 0
        %552 = vmatprep.subr.bf16.mxu0 0
        %553 = vmatpush1.bf16.msra.mxu0 0
        %554 = vmatprep.subr.bf16.mxu0 0
        %555 = vmatpush1.bf16.msra.mxu0 0
        %556 = vmatprep.subr.bf16.mxu0 0
        %557 = vmatpush1.bf16.msra.mxu0 0
        %558 = vmatprep.subr.bf16.mxu0 0
        %559 = vmatpush1.bf16.msra.mxu0 0
        %560 = vmatprep.subr.bf16.mxu0 0
        %561 = vmatpush1.bf16.msra.mxu0 0
        %562 = vmatprep.subr.bf16.mxu0 0
        %563 = vmatpush1.bf16.msra.mxu0 0
        %564 = vmatprep.subr.bf16.mxu0 0
        %565 = vmatpush1.bf16.msra.mxu0 0
        %566 = vmatprep.mubr.bf16.mxu0 0
        %567 = vmatmul.mubr.bf16.gmra.mrb[0].mxu0 %v507
        %v568 = vpop.f32.mrb[0].mxu0
        %v569 = vadd.f32 0.0, %v568
        %v570 = vpop.f32.mrb[0].mxu0
        %v571 = vpop.f32.mrb[0].mxu0
        %v572 = vadd.f32 0.0, %v571
        %v573 = vpop.f32.mrb[0].mxu0
        %574 = vmatprep.mubr.bf16.mxu0 0
        %575 = vmatmul.mubr.bf16.gmra.mrb[0].mxu0 %v510
        %v576 = vpop.f32.mrb[0].mxu0
        %v577 = vadd.f32 0.0, %v576
        %v578 = vpop.f32.mrb[0].mxu0
        %v579 = vpop.f32.mrb[0].mxu0
        %v580 = vadd.f32 0.0, %v579
        %v581 = vpop.f32.mrb[0].mxu0
        %582 = vmatprep.mubr.bf16.mxu0 0
        %583 = vmatmul.mubr.bf16.gmra.mrb[0].mxu0 %v513
        %v584 = vpop.f32.mrb[0].mxu0
        %v585 = vadd.f32 0.0, %v584
        %v586 = vpop.f32.mrb[0].mxu0
        %v587 = vpop.f32.mrb[0].mxu0
        %v588 = vadd.f32 0.0, %v587
        %v589 = vpop.f32.mrb[0].mxu0
        %590 = vmatprep.mubr.bf16.mxu0 0
        %591 = vmatmul.mubr.bf16.gmra.mrb[0].mxu0 %v516
        %v592 = vpop.f32.mrb[0].mxu0
        %v593 = vadd.f32 0.0, %v592
        %v594 = vpop.f32.mrb[0].mxu0
        %v595 = vpop.f32.mrb[0].mxu0
        %v596 = vadd.f32 0.0, %v595
        %v597 = vpop.f32.mrb[0].mxu0
        %598 = vmatprep.mubr.bf16.mxu0 0
        %599 = vmatmul.mubr.bf16.gmra.mrb[0].mxu0 %v519
        %v600 = vpop.f32.mrb[0].mxu0
        %v601 = vadd.f32 0.0, %v600
        %v602 = vpop.f32.mrb[0].mxu0
        %v603 = vpop.f32.mrb[0].mxu0
        %v604 = vadd.f32 0.0, %v603
        %v605 = vpop.f32.mrb[0].mxu0
        %606 = vmatprep.mubr.bf16.mxu0 0
        %607 = vmatmul.mubr.bf16.gmra.mrb[0].mxu0 %v522
        %v608 = vpop.f32.mrb[0].mxu0
        %v609 = vadd.f32 0.0, %v608
        %v610 = vpop.f32.mrb[0].mxu0
        %v611 = vpop.f32.mrb[0].mxu0
        %v612 = vadd.f32 0.0, %v611
        %v613 = vpop.f32.mrb[0].mxu0
        %614 = vmatprep.mubr.bf16.mxu0 0
        %615 = vmatmul.mubr.bf16.gmra.mrb[0].mxu0 %v525
        %v616 = vpop.f32.mrb[0].mxu0
        %v617 = vadd.f32 0.0, %v616
        %v618 = vpop.f32.mrb[0].mxu0
        %v619 = vpop.f32.mrb[0].mxu0
        %v620 = vadd.f32 0.0, %v619
        %v621 = vpop.f32.mrb[0].mxu0
        %622 = vmatprep.mubr.bf16.mxu0 0
        %623 = vmatmul.mubr.bf16.gmra.mrb[0].mxu0 %v528
        %v624 = vpop.f32.mrb[0].mxu0
        %v625 = vadd.f32 0.0, %v624
        %v626 = vpop.f32.mrb[0].mxu0
        %v627 = vpop.f32.mrb[0].mxu0
        %v628 = vadd.f32 0.0, %v627
        %v629 = vpop.f32.mrb[0].mxu0
        %630 = vdwg.mxu0
        %v647 = vunpack.c.l.b16 %v253
        %v648 = vunpack.c.l.b16 %v254
        %v649 = vunpack.c.l.b16 %v256
        %v650 = vunpack.c.l.b16 %v257
        %v651 = vunpack.c.l.b16 %v259
        %v652 = vunpack.c.l.b16 %v260
        %v653 = vunpack.c.l.b16 %v262
        %v654 = vunpack.c.l.b16 %v263
        %v655 = vunpack.c.l.b16 %v265
        %v656 = vunpack.c.l.b16 %v266
        %v657 = vunpack.c.l.b16 %v268
        %v658 = vunpack.c.l.b16 %v269
        %v659 = vunpack.c.l.b16 %v271
        %v660 = vunpack.c.l.b16 %v272
        %v661 = vunpack.c.l.b16 %v274
        %v662 = vunpack.c.l.b16 %v275
        %v663 = vpack.c.b16 %v648, %v647
        %v664 = vpack.c.b16 %v650, %v649
        %v665 = vpack.c.b16 %v652, %v651
        %v666 = vpack.c.b16 %v654, %v653
        %v667 = vpack.c.b16 %v656, %v655
        %v668 = vpack.c.b16 %v658, %v657
        %v669 = vpack.c.b16 %v660, %v659
        %v670 = vpack.c.b16 %v662, %v661
        %v672 = vsel %vm505, %v663, 0
        %v675 = vsel %vm505, %v664, 0
        %v678 = vsel %vm505, %v665, 0
        %v681 = vsel %vm505, %v666, 0
        %v684 = vsel %vm505, %v667, 0
        %v687 = vsel %vm505, %v668, 0
        %v690 = vsel %vm505, %v669, 0
        %v693 = vsel %vm505, %v670, 0
        %v696 = vsel %vm530, %v283, 0
        %698 = vmatprep.subr.bf16.mxu0 0
        %699 = vmatpush1.bf16.msra.mxu0 %v696
        %700 = vmatprep.subr.bf16.mxu0 0
        %701 = vmatpush1.bf16.msra.mxu0 0
        %702 = vmatprep.subr.bf16.mxu0 0
        %703 = vmatpush1.bf16.msra.mxu0 0
        %704 = vmatprep.subr.bf16.mxu0 0
        %705 = vmatpush1.bf16.msra.mxu0 0
        %706 = vmatprep.subr.bf16.mxu0 0
        %707 = vmatpush1.bf16.msra.mxu0 0
        %708 = vmatprep.subr.bf16.mxu0 0
        %709 = vmatpush1.bf16.msra.mxu0 0
        %710 = vmatprep.subr.bf16.mxu0 0
        %711 = vmatpush1.bf16.msra.mxu0 0
        %712 = vmatprep.subr.bf16.mxu0 0
        %713 = vmatpush1.bf16.msra.mxu0 0
        %714 = vmatprep.subr.bf16.mxu0 0
        %715 = vmatpush1.bf16.msra.mxu0 0
        %716 = vmatprep.subr.bf16.mxu0 0
        %717 = vmatpush1.bf16.msra.mxu0 0
        %718 = vmatprep.subr.bf16.mxu0 0
        %719 = vmatpush1.bf16.msra.mxu0 0
        %720 = vmatprep.subr.bf16.mxu0 0
        %721 = vmatpush1.bf16.msra.mxu0 0
        %722 = vmatprep.subr.bf16.mxu0 0
        %723 = vmatpush1.bf16.msra.mxu0 0
        %724 = vmatprep.subr.bf16.mxu0 0
        %725 = vmatpush1.bf16.msra.mxu0 0
        %726 = vmatprep.subr.bf16.mxu0 0
        %727 = vmatpush1.bf16.msra.mxu0 0
        %728 = vmatprep.subr.bf16.mxu0 0
        %729 = vmatpush1.bf16.msra.mxu0 0
        %730 = vmatprep.mubr.bf16.mxu0 0
        %731 = vmatmul.mubr.bf16.gmra.mrb[0].mxu0 %v672
        %v732 = vpop.f32.mrb[0].mxu0
        %v733 = vadd.f32 %v569, %v732
        %v734 = vpop.f32.mrb[0].mxu0
        %v735 = vpop.f32.mrb[0].mxu0
        %v736 = vadd.f32 %v572, %v735
        %v737 = vpop.f32.mrb[0].mxu0
        %738 = vmatprep.mubr.bf16.mxu0 0
        %739 = vmatmul.mubr.bf16.gmra.mrb[0].mxu0 %v675
        %v740 = vpop.f32.mrb[0].mxu0
        %v741 = vadd.f32 %v577, %v740
        %v742 = vpop.f32.mrb[0].mxu0
        %v743 = vpop.f32.mrb[0].mxu0
        %v744 = vadd.f32 %v580, %v743
        %v745 = vpop.f32.mrb[0].mxu0
        %746 = vmatprep.mubr.bf16.mxu0 0
        %747 = vmatmul.mubr.bf16.gmra.mrb[0].mxu0 %v678
        %v748 = vpop.f32.mrb[0].mxu0
        %v749 = vadd.f32 %v585, %v748
        %v750 = vpop.f32.mrb[0].mxu0
        %v751 = vpop.f32.mrb[0].mxu0
        %v752 = vadd.f32 %v588, %v751
        %v753 = vpop.f32.mrb[0].mxu0
        %754 = vmatprep.mubr.bf16.mxu0 0
        %755 = vmatmul.mubr.bf16.gmra.mrb[0].mxu0 %v681
        %v756 = vpop.f32.mrb[0].mxu0
        %v757 = vadd.f32 %v593, %v756
        %v758 = vpop.f32.mrb[0].mxu0
        %v759 = vpop.f32.mrb[0].mxu0
        %v760 = vadd.f32 %v596, %v759
        %v761 = vpop.f32.mrb[0].mxu0
        %762 = vmatprep.mubr.bf16.mxu0 0
        %763 = vmatmul.mubr.bf16.gmra.mrb[0].mxu0 %v684
        %v764 = vpop.f32.mrb[0].mxu0
        %v765 = vadd.f32 %v601, %v764
        %v766 = vpop.f32.mrb[0].mxu0
        %v767 = vpop.f32.mrb[0].mxu0
        %v768 = vadd.f32 %v604, %v767
        %v769 = vpop.f32.mrb[0].mxu0
        %770 = vmatprep.mubr.bf16.mxu0 0
        %771 = vmatmul.mubr.bf16.gmra.mrb[0].mxu0 %v687
        %v772 = vpop.f32.mrb[0].mxu0
        %v773 = vadd.f32 %v609, %v772
        %v774 = vpop.f32.mrb[0].mxu0
        %v775 = vpop.f32.mrb[0].mxu0
        %v776 = vadd.f32 %v612, %v775
        %v777 = vpop.f32.mrb[0].mxu0
        %778 = vmatprep.mubr.bf16.mxu0 0
        %779 = vmatmul.mubr.bf16.gmra.mrb[0].mxu0 %v690
        %v780 = vpop.f32.mrb[0].mxu0
        %v781 = vadd.f32 %v617, %v780
        %v782 = vpop.f32.mrb[0].mxu0
        %v783 = vpop.f32.mrb[0].mxu0
        %v784 = vadd.f32 %v620, %v783
        %v785 = vpop.f32.mrb[0].mxu0
        %786 = vmatprep.mubr.bf16.mxu0 0
        %787 = vmatmul.mubr.bf16.gmra.mrb[0].mxu0 %v693
        %v788 = vpop.f32.mrb[0].mxu0
        %v789 = vadd.f32 %v625, %v788
        %v790 = vpop.f32.mrb[0].mxu0
        %v791 = vpop.f32.mrb[0].mxu0
        %v792 = vadd.f32 %v628, %v791
        %v793 = vpop.f32.mrb[0].mxu0
        %794 = vdwg.mxu0
        %vm803 = vcmask 1042432
        %vm804 = vcmask 1046532
        %vm805 = vmor %vm803, %vm804
        %v806 = vrot.slane %v253, 5
        %v807 = vrot.slane %v806, 4
        %v808 = vrot.slane %v254, 5
        %v809 = vsel %vm805, %v807, %v808
        %v810 = vrot.slane %v808, 4
        %v811 = vrot.slane %v255, 5
        %v812 = vsel %vm805, %v810, %v811
        %v813 = vrot.slane %v256, 5
        %v814 = vrot.slane %v813, 4
        %v815 = vrot.slane %v257, 5
        %v816 = vsel %vm805, %v814, %v815
        %v817 = vrot.slane %v815, 4
        %v818 = vrot.slane %v258, 5
        %v819 = vsel %vm805, %v817, %v818
        %v820 = vrot.slane %v259, 5
        %v821 = vrot.slane %v820, 4
        %v822 = vrot.slane %v260, 5
        %v823 = vsel %vm805, %v821, %v822
        %v824 = vrot.slane %v822, 4
        %v825 = vrot.slane %v261, 5
        %v826 = vsel %vm805, %v824, %v825
        %v827 = vrot.slane %v262, 5
        %v828 = vrot.slane %v827, 4
        %v829 = vrot.slane %v263, 5
        %v830 = vsel %vm805, %v828, %v829
        %v831 = vrot.slane %v829, 4
        %v832 = vrot.slane %v264, 5
        %v833 = vsel %vm805, %v831, %v832
        %v834 = vrot.slane %v265, 5
        %v835 = vrot.slane %v834, 4
        %v836 = vrot.slane %v266, 5
        %v837 = vsel %vm805, %v835, %v836
        %v838 = vrot.slane %v836, 4
        %v839 = vrot.slane %v267, 5
        %v840 = vsel %vm805, %v838, %v839
        %v841 = vrot.slane %v268, 5
        %v842 = vrot.slane %v841, 4
        %v843 = vrot.slane %v269, 5
        %v844 = vsel %vm805, %v842, %v843
        %v845 = vrot.slane %v843, 4
        %v846 = vrot.slane %v270, 5
        %v847 = vsel %vm805, %v845, %v846
        %v848 = vrot.slane %v271, 5
        %v849 = vrot.slane %v848, 4
        %v850 = vrot.slane %v272, 5
        %v851 = vsel %vm805, %v849, %v850
        %v852 = vrot.slane %v850, 4
        %v853 = vrot.slane %v273, 5
        %v854 = vsel %vm805, %v852, %v853
        %v855 = vrot.slane %v274, 5
        %v856 = vrot.slane %v855, 4
        %v857 = vrot.slane %v275, 5
        %v858 = vsel %vm805, %v856, %v857
        %v859 = vrot.slane %v857, 4
        %v860 = vrot.slane %v276, 5
        %v861 = vsel %vm805, %v859, %v860
        %s862 = scalar_lea.vmem %s1, 4
        %v863 = vld [vmem:[%s862] sm:$0x3]
        %v864 = vunpack.c.l.b16 %v809
        %v865 = vunpack.c.l.b16 %v812
        %v866 = vunpack.c.l.b16 %v816
        %v867 = vunpack.c.l.b16 %v819
        %v868 = vunpack.c.l.b16 %v823
        %v869 = vunpack.c.l.b16 %v826
        %v870 = vunpack.c.l.b16 %v830
        %v871 = vunpack.c.l.b16 %v833
        %v872 = vunpack.c.l.b16 %v837
        %v873 = vunpack.c.l.b16 %v840
        %v874 = vunpack.c.l.b16 %v844
        %v875 = vunpack.c.l.b16 %v847
        %v876 = vunpack.c.l.b16 %v851
        %v877 = vunpack.c.l.b16 %v854
        %v878 = vunpack.c.l.b16 %v858
        %v879 = vunpack.c.l.b16 %v861
        %v880 = vpack.c.b16 %v865, %v864
        %v881 = vpack.c.b16 %v867, %v866
        %v882 = vpack.c.b16 %v869, %v868
        %v883 = vpack.c.b16 %v871, %v870
        %v884 = vpack.c.b16 %v873, %v872
        %v885 = vpack.c.b16 %v875, %v874
        %v886 = vpack.c.b16 %v877, %v876
        %v887 = vpack.c.b16 %v879, %v878
        %v889 = vsel %vm505, %v880, 0
        %v892 = vsel %vm505, %v881, 0
        %v895 = vsel %vm505, %v882, 0
        %v898 = vsel %vm505, %v883, 0
        %v901 = vsel %vm505, %v884, 0
        %v904 = vsel %vm505, %v885, 0
        %v907 = vsel %vm505, %v886, 0
        %v910 = vsel %vm505, %v887, 0
        %v913 = vsel %vm530, %v863, 0
        %915 = vmatprep.subr.bf16.mxu0 0
        %916 = vmatpush1.bf16.msra.mxu0 %v913
        %917 = vmatprep.subr.bf16.mxu0 0
        %918 = vmatpush1.bf16.msra.mxu0 0
        %919 = vmatprep.subr.bf16.mxu0 0
        %920 = vmatpush1.bf16.msra.mxu0 0
        %921 = vmatprep.subr.bf16.mxu0 0
        %922 = vmatpush1.bf16.msra.mxu0 0
        %923 = vmatprep.subr.bf16.mxu0 0
        %924 = vmatpush1.bf16.msra.mxu0 0
        %925 = vmatprep.subr.bf16.mxu0 0
        %926 = vmatpush1.bf16.msra.mxu0 0
        %927 = vmatprep.subr.bf16.mxu0 0
        %928 = vmatpush1.bf16.msra.mxu0 0
        %929 = vmatprep.subr.bf16.mxu0 0
        %930 = vmatpush1.bf16.msra.mxu0 0
        %931 = vmatprep.subr.bf16.mxu0 0
        %932 = vmatpush1.bf16.msra.mxu0 0
        %933 = vmatprep.subr.bf16.mxu0 0
        %934 = vmatpush1.bf16.msra.mxu0 0
        %935 = vmatprep.subr.bf16.mxu0 0
        %936 = vmatpush1.bf16.msra.mxu0 0
        %937 = vmatprep.subr.bf16.mxu0 0
        %938 = vmatpush1.bf16.msra.mxu0 0
        %939 = vmatprep.subr.bf16.mxu0 0
        %940 = vmatpush1.bf16.msra.mxu0 0
        %941 = vmatprep.subr.bf16.mxu0 0
        %942 = vmatpush1.bf16.msra.mxu0 0
        %943 = vmatprep.subr.bf16.mxu0 0
        %944 = vmatpush1.bf16.msra.mxu0 0
        %945 = vmatprep.subr.bf16.mxu0 0
        %946 = vmatpush1.bf16.msra.mxu0 0
        %947 = vmatprep.mubr.bf16.mxu0 0
        %948 = vmatmul.mubr.bf16.gmra.mrb[0].mxu0 %v889
        %v949 = vpop.f32.mrb[0].mxu0
        %v950 = vadd.f32 0.0, %v949
        %v951 = vpop.f32.mrb[0].mxu0
        %v952 = vpop.f32.mrb[0].mxu0
        %v953 = vadd.f32 0.0, %v952
        %v954 = vpop.f32.mrb[0].mxu0
        %955 = vmatprep.mubr.bf16.mxu0 0
        %956 = vmatmul.mubr.bf16.gmra.mrb[0].mxu0 %v892
        %v957 = vpop.f32.mrb[0].mxu0
        %v958 = vadd.f32 0.0, %v957
        %v959 = vpop.f32.mrb[0].mxu0
        %v960 = vpop.f32.mrb[0].mxu0
        %v961 = vadd.f32 0.0, %v960
        %v962 = vpop.f32.mrb[0].mxu0
        %963 = vmatprep.mubr.bf16.mxu0 0
        %964 = vmatmul.mubr.bf16.gmra.mrb[0].mxu0 %v895
        %v965 = vpop.f32.mrb[0].mxu0
        %v966 = vadd.f32 0.0, %v965
        %v967 = vpop.f32.mrb[0].mxu0
        %v968 = vpop.f32.mrb[0].mxu0
        %v969 = vadd.f32 0.0, %v968
        %v970 = vpop.f32.mrb[0].mxu0
        %971 = vmatprep.mubr.bf16.mxu0 0
        %972 = vmatmul.mubr.bf16.gmra.mrb[0].mxu0 %v898
        %v973 = vpop.f32.mrb[0].mxu0
        %v974 = vadd.f32 0.0, %v973
        %v975 = vpop.f32.mrb[0].mxu0
        %v976 = vpop.f32.mrb[0].mxu0
        %v977 = vadd.f32 0.0, %v976
        %v978 = vpop.f32.mrb[0].mxu0
        %979 = vmatprep.mubr.bf16.mxu0 0
        %980 = vmatmul.mubr.bf16.gmra.mrb[0].mxu0 %v901
        %v981 = vpop.f32.mrb[0].mxu0
        %v982 = vadd.f32 0.0, %v981
        %v983 = vpop.f32.mrb[0].mxu0
        %v984 = vpop.f32.mrb[0].mxu0
        %v985 = vadd.f32 0.0, %v984
        %v986 = vpop.f32.mrb[0].mxu0
        %987 = vmatprep.mubr.bf16.mxu0 0
        %988 = vmatmul.mubr.bf16.gmra.mrb[0].mxu0 %v904
        %v989 = vpop.f32.mrb[0].mxu0
        %v990 = vadd.f32 0.0, %v989
        %v991 = vpop.f32.mrb[0].mxu0
        %v992 = vpop.f32.mrb[0].mxu0
        %v993 = vadd.f32 0.0, %v992
        %v994 = vpop.f32.mrb[0].mxu0
        %995 = vmatprep.mubr.bf16.mxu0 0
        %996 = vmatmul.mubr.bf16.gmra.mrb[0].mxu0 %v907
        %v997 = vpop.f32.mrb[0].mxu0
        %v998 = vadd.f32 0.0, %v997
        %v999 = vpop.f32.mrb[0].mxu0
        %v1000 = vpop.f32.mrb[0].mxu0
        %v1001 = vadd.f32 0.0, %v1000
        %v1002 = vpop.f32.mrb[0].mxu0
        %1003 = vmatprep.mubr.bf16.mxu0 0
        %1004 = vmatmul.mubr.bf16.gmra.mrb[0].mxu0 %v910
        %v1005 = vpop.f32.mrb[0].mxu0
        %v1006 = vadd.f32 0.0, %v1005
        %v1007 = vpop.f32.mrb[0].mxu0
        %v1008 = vpop.f32.mrb[0].mxu0
        %v1009 = vadd.f32 0.0, %v1008
        %v1010 = vpop.f32.mrb[0].mxu0
        %1011 = vdwg.mxu0
        %v1012 = vadd.f32 %v733, %v950
        %v1013 = vadd.f32 %v736, %v953
        %v1014 = vadd.f32 %v741, %v958
        %v1015 = vadd.f32 %v744, %v961
        %v1016 = vadd.f32 %v749, %v966
        %v1017 = vadd.f32 %v752, %v969
        %v1018 = vadd.f32 %v757, %v974
        %v1019 = vadd.f32 %v760, %v977
        %v1020 = vadd.f32 %v765, %v982
        %v1021 = vadd.f32 %v768, %v985
        %v1022 = vadd.f32 %v773, %v990
        %v1023 = vadd.f32 %v776, %v993
        %v1024 = vadd.f32 %v781, %v998
        %v1025 = vadd.f32 %v784, %v1001
        %v1026 = vadd.f32 %v789, %v1006
        %v1027 = vadd.f32 %v792, %v1009
        %s1028 = scalar_lea.vmem %s1, 6
        %v1029 = vld [vmem:[%s1028] sm:$0x3]
        %v1032 = vunpack.c.l.b16 %v277
        %v1033 = vunpack.c.l.b16 %v278
        %v1034 = vpack.c.b16 %v1033, %v1032
        %v1036 = vsel %vm505, %v1034, 0
        %v1039 = vsel %vm530, %v1029, 0
        %1041 = vmatprep.subr.bf16.mxu0 0
        %1042 = vmatpush1.bf16.msra.mxu0 %v1039
        %1043 = vmatprep.subr.bf16.mxu0 0
        %1044 = vmatpush1.bf16.msra.mxu0 0
        %1045 = vmatprep.subr.bf16.mxu0 0
        %1046 = vmatpush1.bf16.msra.mxu0 0
        %1047 = vmatprep.subr.bf16.mxu0 0
        %1048 = vmatpush1.bf16.msra.mxu0 0
        %1049 = vmatprep.subr.bf16.mxu0 0
        %1050 = vmatpush1.bf16.msra.mxu0 0
        %1051 = vmatprep.subr.bf16.mxu0 0
        %1052 = vmatpush1.bf16.msra.mxu0 0
        %1053 = vmatprep.subr.bf16.mxu0 0
        %1054 = vmatpush1.bf16.msra.mxu0 0
        %1055 = vmatprep.subr.bf16.mxu0 0
        %1056 = vmatpush1.bf16.msra.mxu0 0
        %1057 = vmatprep.subr.bf16.mxu0 0
        %1058 = vmatpush1.bf16.msra.mxu0 0
        %1059 = vmatprep.subr.bf16.mxu0 0
        %1060 = vmatpush1.bf16.msra.mxu0 0
        %1061 = vmatprep.subr.bf16.mxu0 0
        %1062 = vmatpush1.bf16.msra.mxu0 0
        %1063 = vmatprep.subr.bf16.mxu0 0
        %1064 = vmatpush1.bf16.msra.mxu0 0
        %1065 = vmatprep.subr.bf16.mxu0 0
        %1066 = vmatpush1.bf16.msra.mxu0 0
        %1067 = vmatprep.subr.bf16.mxu0 0
        %1068 = vmatpush1.bf16.msra.mxu0 0
        %1069 = vmatprep.subr.bf16.mxu0 0
        %1070 = vmatpush1.bf16.msra.mxu0 0
        %1071 = vmatprep.subr.bf16.mxu0 0
        %1072 = vmatpush1.bf16.msra.mxu0 0
        %1073 = vmatprep.mubr.bf16.mxu0 0
        %1074 = vmatmul.mubr.bf16.gmra.mrb[0].mxu0 %v675
        %v1075 = vpop.f32.mrb[0].mxu0
        %v1076 = vadd.f32 0.0, %v1075
        %v1077 = vpop.f32.mrb[0].mxu0
        %v1078 = vpop.f32.mrb[0].mxu0
        %v1079 = vadd.f32 0.0, %v1078
        %v1080 = vpop.f32.mrb[0].mxu0
        %1081 = vmatprep.mubr.bf16.mxu0 0
        %1082 = vmatmul.mubr.bf16.gmra.mrb[0].mxu0 %v678
        %v1083 = vpop.f32.mrb[0].mxu0
        %v1084 = vadd.f32 0.0, %v1083
        %v1085 = vpop.f32.mrb[0].mxu0
        %v1086 = vpop.f32.mrb[0].mxu0
        %v1087 = vadd.f32 0.0, %v1086
        %v1088 = vpop.f32.mrb[0].mxu0
        %1089 = vmatprep.mubr.bf16.mxu0 0
        %1090 = vmatmul.mubr.bf16.gmra.mrb[0].mxu0 %v681
        %v1091 = vpop.f32.mrb[0].mxu0
        %v1092 = vadd.f32 0.0, %v1091
        %v1093 = vpop.f32.mrb[0].mxu0
        %v1094 = vpop.f32.mrb[0].mxu0
        %v1095 = vadd.f32 0.0, %v1094
        %v1096 = vpop.f32.mrb[0].mxu0
        %1097 = vmatprep.mubr.bf16.mxu0 0
        %1098 = vmatmul.mubr.bf16.gmra.mrb[0].mxu0 %v684
        %v1099 = vpop.f32.mrb[0].mxu0
        %v1100 = vadd.f32 0.0, %v1099
        %v1101 = vpop.f32.mrb[0].mxu0
        %v1102 = vpop.f32.mrb[0].mxu0
        %v1103 = vadd.f32 0.0, %v1102
        %v1104 = vpop.f32.mrb[0].mxu0
        %1105 = vmatprep.mubr.bf16.mxu0 0
        %1106 = vmatmul.mubr.bf16.gmra.mrb[0].mxu0 %v687
        %v1107 = vpop.f32.mrb[0].mxu0
        %v1108 = vadd.f32 0.0, %v1107
        %v1109 = vpop.f32.mrb[0].mxu0
        %v1110 = vpop.f32.mrb[0].mxu0
        %v1111 = vadd.f32 0.0, %v1110
        %v1112 = vpop.f32.mrb[0].mxu0
        %1113 = vmatprep.mubr.bf16.mxu0 0
        %1114 = vmatmul.mubr.bf16.gmra.mrb[0].mxu0 %v690
        %v1115 = vpop.f32.mrb[0].mxu0
        %v1116 = vadd.f32 0.0, %v1115
        %v1117 = vpop.f32.mrb[0].mxu0
        %v1118 = vpop.f32.mrb[0].mxu0
        %v1119 = vadd.f32 0.0, %v1118
        %v1120 = vpop.f32.mrb[0].mxu0
        %1121 = vmatprep.mubr.bf16.mxu0 0
        %1122 = vmatmul.mubr.bf16.gmra.mrb[0].mxu0 %v693
        %v1123 = vpop.f32.mrb[0].mxu0
        %v1124 = vadd.f32 0.0, %v1123
        %v1125 = vpop.f32.mrb[0].mxu0
        %v1126 = vpop.f32.mrb[0].mxu0
        %v1127 = vadd.f32 0.0, %v1126
        %v1128 = vpop.f32.mrb[0].mxu0
        %1129 = vmatprep.mubr.bf16.mxu0 0
        %1130 = vmatmul.mubr.bf16.gmra.mrb[0].mxu0 %v1036
        %v1131 = vpop.f32.mrb[0].mxu0
        %v1132 = vadd.f32 0.0, %v1131
        %v1133 = vpop.f32.mrb[0].mxu0
        %v1134 = vpop.f32.mrb[0].mxu0
        %v1135 = vadd.f32 0.0, %v1134
        %v1136 = vpop.f32.mrb[0].mxu0
        %1137 = vdwg.mxu0
        %v1138 = vadd.f32 %v1012, %v1076
        %v1139 = vadd.f32 %v1013, %v1079
        %v1140 = vadd.f32 %v1014, %v1084
        %v1141 = vadd.f32 %v1015, %v1087
        %v1142 = vadd.f32 %v1016, %v1092
        %v1143 = vadd.f32 %v1017, %v1095
        %v1144 = vadd.f32 %v1018, %v1100
        %v1145 = vadd.f32 %v1019, %v1103
        %v1146 = vadd.f32 %v1020, %v1108
        %v1147 = vadd.f32 %v1021, %v1111
        %v1148 = vadd.f32 %v1022, %v1116
        %v1149 = vadd.f32 %v1023, %v1119
        %v1150 = vadd.f32 %v1024, %v1124
        %v1151 = vadd.f32 %v1025, %v1127
        %v1152 = vadd.f32 %v1026, %v1132
        %v1153 = vadd.f32 %v1027, %v1135
        %v1155 = vshrl.u32 %v277, 16
        %v1157 = vrot.slane %v1155, 4
        %v1158 = vshll.u32 %v277, 16
        %v1160 = vrot.slane %v1158, 5
        %v1161 = vor.u32 %v1157, %v1160
        %v1162 = vrot.slane %v1161, 4
        %v1164 = vshll.u32 %v278, 16
        %v1166 = vrot.slane %v1164, 5
        %v1167 = vsel %vm286, %v1162, %v1166
        %v1168 = vshrl.u32 %v278, 16
        %v1170 = vrot.slane %v1168, 4
        %v1171 = vor.u32 %v1170, %v1166
        %v1172 = vrot.slane %v1171, 4
        %v1174 = vshll.u32 %v279, 16
        %v1176 = vrot.slane %v1174, 5
        %v1177 = vsel %vm286, %v1172, %v1176
        %s1178 = scalar_lea.vmem %s1, 8
        %v1179 = vld [vmem:[%s1178] sm:$0x3]
        %v1180 = vunpack.c.l.b16 %v1167
        %v1181 = vunpack.c.l.b16 %v1177
        %v1182 = vpack.c.b16 %v1181, %v1180
        %v1184 = vsel %vm505, %v1182, 0
        %v1187 = vsel %vm530, %v1179, 0
        %1189 = vmatprep.subr.bf16.mxu0 0
        %1190 = vmatpush1.bf16.msra.mxu0 %v1187
        %1191 = vmatprep.subr.bf16.mxu0 0
        %1192 = vmatpush1.bf16.msra.mxu0 0
        %1193 = vmatprep.subr.bf16.mxu0 0
        %1194 = vmatpush1.bf16.msra.mxu0 0
        %1195 = vmatprep.subr.bf16.mxu0 0
        %1196 = vmatpush1.bf16.msra.mxu0 0
        %1197 = vmatprep.subr.bf16.mxu0 0
        %1198 = vmatpush1.bf16.msra.mxu0 0
        %1199 = vmatprep.subr.bf16.mxu0 0
        %1200 = vmatpush1.bf16.msra.mxu0 0
        %1201 = vmatprep.subr.bf16.mxu0 0
        %1202 = vmatpush1.bf16.msra.mxu0 0
        %1203 = vmatprep.subr.bf16.mxu0 0
        %1204 = vmatpush1.bf16.msra.mxu0 0
        %1205 = vmatprep.subr.bf16.mxu0 0
        %1206 = vmatpush1.bf16.msra.mxu0 0
        %1207 = vmatprep.subr.bf16.mxu0 0
        %1208 = vmatpush1.bf16.msra.mxu0 0
        %1209 = vmatprep.subr.bf16.mxu0 0
        %1210 = vmatpush1.bf16.msra.mxu0 0
        %1211 = vmatprep.subr.bf16.mxu0 0
        %1212 = vmatpush1.bf16.msra.mxu0 0
        %1213 = vmatprep.subr.bf16.mxu0 0
        %1214 = vmatpush1.bf16.msra.mxu0 0
        %1215 = vmatprep.subr.bf16.mxu0 0
        %1216 = vmatpush1.bf16.msra.mxu0 0
        %1217 = vmatprep.subr.bf16.mxu0 0
        %1218 = vmatpush1.bf16.msra.mxu0 0
        %1219 = vmatprep.subr.bf16.mxu0 0
        %1220 = vmatpush1.bf16.msra.mxu0 0
        %1221 = vmatprep.mubr.bf16.mxu0 0
        %1222 = vmatmul.mubr.bf16.gmra.mrb[0].mxu0 %v510
        %v1223 = vpop.f32.mrb[0].mxu0
        %v1224 = vadd.f32 0.0, %v1223
        %v1225 = vpop.f32.mrb[0].mxu0
        %v1226 = vpop.f32.mrb[0].mxu0
        %v1227 = vadd.f32 0.0, %v1226
        %v1228 = vpop.f32.mrb[0].mxu0
        %1229 = vmatprep.mubr.bf16.mxu0 0
        %1230 = vmatmul.mubr.bf16.gmra.mrb[0].mxu0 %v513
        %v1231 = vpop.f32.mrb[0].mxu0
        %v1232 = vadd.f32 0.0, %v1231
        %v1233 = vpop.f32.mrb[0].mxu0
        %v1234 = vpop.f32.mrb[0].mxu0
        %v1235 = vadd.f32 0.0, %v1234
        %v1236 = vpop.f32.mrb[0].mxu0
        %1237 = vmatprep.mubr.bf16.mxu0 0
        %1238 = vmatmul.mubr.bf16.gmra.mrb[0].mxu0 %v516
        %v1239 = vpop.f32.mrb[0].mxu0
        %v1240 = vadd.f32 0.0, %v1239
        %v1241 = vpop.f32.mrb[0].mxu0
        %v1242 = vpop.f32.mrb[0].mxu0
        %v1243 = vadd.f32 0.0, %v1242
        %v1244 = vpop.f32.mrb[0].mxu0
        %1245 = vmatprep.mubr.bf16.mxu0 0
        %1246 = vmatmul.mubr.bf16.gmra.mrb[0].mxu0 %v519
        %v1247 = vpop.f32.mrb[0].mxu0
        %v1248 = vadd.f32 0.0, %v1247
        %v1249 = vpop.f32.mrb[0].mxu0
        %v1250 = vpop.f32.mrb[0].mxu0
        %v1251 = vadd.f32 0.0, %v1250
        %v1252 = vpop.f32.mrb[0].mxu0
        %1253 = vmatprep.mubr.bf16.mxu0 0
        %1254 = vmatmul.mubr.bf16.gmra.mrb[0].mxu0 %v522
        %v1255 = vpop.f32.mrb[0].mxu0
        %v1256 = vadd.f32 0.0, %v1255
        %v1257 = vpop.f32.mrb[0].mxu0
        %v1258 = vpop.f32.mrb[0].mxu0
        %v1259 = vadd.f32 0.0, %v1258
        %v1260 = vpop.f32.mrb[0].mxu0
        %1261 = vmatprep.mubr.bf16.mxu0 0
        %1262 = vmatmul.mubr.bf16.gmra.mrb[0].mxu0 %v525
        %v1263 = vpop.f32.mrb[0].mxu0
        %v1264 = vadd.f32 0.0, %v1263
        %v1265 = vpop.f32.mrb[0].mxu0
        %v1266 = vpop.f32.mrb[0].mxu0
        %v1267 = vadd.f32 0.0, %v1266
        %v1268 = vpop.f32.mrb[0].mxu0
        %1269 = vmatprep.mubr.bf16.mxu0 0
        %1270 = vmatmul.mubr.bf16.gmra.mrb[0].mxu0 %v528
        %v1271 = vpop.f32.mrb[0].mxu0
        %v1272 = vadd.f32 0.0, %v1271
        %v1273 = vpop.f32.mrb[0].mxu0
        %v1274 = vpop.f32.mrb[0].mxu0
        %v1275 = vadd.f32 0.0, %v1274
        %v1276 = vpop.f32.mrb[0].mxu0
        %1277 = vmatprep.mubr.bf16.mxu0 0
        %1278 = vmatmul.mubr.bf16.gmra.mrb[0].mxu0 %v1184
        %v1279 = vpop.f32.mrb[0].mxu0
        %v1280 = vadd.f32 0.0, %v1279
        %v1281 = vpop.f32.mrb[0].mxu0
        %v1282 = vpop.f32.mrb[0].mxu0
        %v1283 = vadd.f32 0.0, %v1282
        %v1284 = vpop.f32.mrb[0].mxu0
        %1285 = vdwg.mxu0
        %v1286 = vadd.f32 %v1138, %v1224
        %v1287 = vadd.f32 %v1139, %v1227
        %v1288 = vadd.f32 %v1140, %v1232
        %v1289 = vadd.f32 %v1141, %v1235
        %v1290 = vadd.f32 %v1142, %v1240
        %v1291 = vadd.f32 %v1143, %v1243
        %v1292 = vadd.f32 %v1144, %v1248
        %v1293 = vadd.f32 %v1145, %v1251
        %v1294 = vadd.f32 %v1146, %v1256
        %v1295 = vadd.f32 %v1147, %v1259
        %v1296 = vadd.f32 %v1148, %v1264
        %v1297 = vadd.f32 %v1149, %v1267
        %v1298 = vadd.f32 %v1150, %v1272
        %v1299 = vadd.f32 %v1151, %v1275
        %v1300 = vadd.f32 %v1152, %v1280
        %v1301 = vadd.f32 %v1153, %v1283
        %v1303 = vrot.slane %v277, 5
        %v1304 = vrot.slane %v1303, 4
        %v1305 = vrot.slane %v278, 5
        %v1306 = vsel %vm805, %v1304, %v1305
        %v1307 = vrot.slane %v1305, 4
        %v1308 = vrot.slane %v279, 5
        %v1309 = vsel %vm805, %v1307, %v1308
        %s1310 = scalar_lea.vmem %s1, 10
        %v1311 = vld [vmem:[%s1310] sm:$0x3]
        %v1312 = vunpack.c.l.b16 %v1306
        %v1313 = vunpack.c.l.b16 %v1309
        %v1314 = vpack.c.b16 %v1313, %v1312
        %v1316 = vsel %vm505, %v1314, 0
        %v1319 = vsel %vm530, %v1311, 0
        %1321 = vmatprep.subr.bf16.mxu0 0
        %1322 = vmatpush1.bf16.msra.mxu0 %v1319
        %1323 = vmatprep.subr.bf16.mxu0 0
        %1324 = vmatpush1.bf16.msra.mxu0 0
        %1325 = vmatprep.subr.bf16.mxu0 0
        %1326 = vmatpush1.bf16.msra.mxu0 0
        %1327 = vmatprep.subr.bf16.mxu0 0
        %1328 = vmatpush1.bf16.msra.mxu0 0
        %1329 = vmatprep.subr.bf16.mxu0 0
        %1330 = vmatpush1.bf16.msra.mxu0 0
        %1331 = vmatprep.subr.bf16.mxu0 0
        %1332 = vmatpush1.bf16.msra.mxu0 0
        %1333 = vmatprep.subr.bf16.mxu0 0
        %1334 = vmatpush1.bf16.msra.mxu0 0
        %1335 = vmatprep.subr.bf16.mxu0 0
        %1336 = vmatpush1.bf16.msra.mxu0 0
        %1337 = vmatprep.subr.bf16.mxu0 0
        %1338 = vmatpush1.bf16.msra.mxu0 0
        %1339 = vmatprep.subr.bf16.mxu0 0
        %1340 = vmatpush1.bf16.msra.mxu0 0
        %1341 = vmatprep.subr.bf16.mxu0 0
        %1342 = vmatpush1.bf16.msra.mxu0 0
        %1343 = vmatprep.subr.bf16.mxu0 0
        %1344 = vmatpush1.bf16.msra.mxu0 0
        %1345 = vmatprep.subr.bf16.mxu0 0
        %1346 = vmatpush1.bf16.msra.mxu0 0
        %1347 = vmatprep.subr.bf16.mxu0 0
        %1348 = vmatpush1.bf16.msra.mxu0 0
        %1349 = vmatprep.subr.bf16.mxu0 0
        %1350 = vmatpush1.bf16.msra.mxu0 0
        %1351 = vmatprep.subr.bf16.mxu0 0
        %1352 = vmatpush1.bf16.msra.mxu0 0
        %1353 = vmatprep.mubr.bf16.mxu0 0
        %1354 = vmatmul.mubr.bf16.gmra.mrb[0].mxu0 %v892
        %v1355 = vpop.f32.mrb[0].mxu0
        %v1356 = vadd.f32 0.0, %v1355
        %v1357 = vpop.f32.mrb[0].mxu0
        %v1358 = vpop.f32.mrb[0].mxu0
        %v1359 = vadd.f32 0.0, %v1358
        %v1360 = vpop.f32.mrb[0].mxu0
        %1361 = vmatprep.mubr.bf16.mxu0 0
        %1362 = vmatmul.mubr.bf16.gmra.mrb[0].mxu0 %v895
        %v1363 = vpop.f32.mrb[0].mxu0
        %v1364 = vadd.f32 0.0, %v1363
        %v1365 = vpop.f32.mrb[0].mxu0
        %v1366 = vpop.f32.mrb[0].mxu0
        %v1367 = vadd.f32 0.0, %v1366
        %v1368 = vpop.f32.mrb[0].mxu0
        %1369 = vmatprep.mubr.bf16.mxu0 0
        %1370 = vmatmul.mubr.bf16.gmra.mrb[0].mxu0 %v898
        %v1371 = vpop.f32.mrb[0].mxu0
        %v1372 = vadd.f32 0.0, %v1371
        %v1373 = vpop.f32.mrb[0].mxu0
        %v1374 = vpop.f32.mrb[0].mxu0
        %v1375 = vadd.f32 0.0, %v1374
        %v1376 = vpop.f32.mrb[0].mxu0
        %1377 = vmatprep.mubr.bf16.mxu0 0
        %1378 = vmatmul.mubr.bf16.gmra.mrb[0].mxu0 %v901
        %v1379 = vpop.f32.mrb[0].mxu0
        %v1380 = vadd.f32 0.0, %v1379
        %v1381 = vpop.f32.mrb[0].mxu0
        %v1382 = vpop.f32.mrb[0].mxu0
        %v1383 = vadd.f32 0.0, %v1382
        %v1384 = vpop.f32.mrb[0].mxu0
        %1385 = vmatprep.mubr.bf16.mxu0 0
        %1386 = vmatmul.mubr.bf16.gmra.mrb[0].mxu0 %v904
        %v1387 = vpop.f32.mrb[0].mxu0
        %v1388 = vadd.f32 0.0, %v1387
        %v1389 = vpop.f32.mrb[0].mxu0
        %v1390 = vpop.f32.mrb[0].mxu0
        %v1391 = vadd.f32 0.0, %v1390
        %v1392 = vpop.f32.mrb[0].mxu0
        %1393 = vmatprep.mubr.bf16.mxu0 0
        %1394 = vmatmul.mubr.bf16.gmra.mrb[0].mxu0 %v907
        %v1395 = vpop.f32.mrb[0].mxu0
        %v1396 = vadd.f32 0.0, %v1395
        %v1397 = vpop.f32.mrb[0].mxu0
        %v1398 = vpop.f32.mrb[0].mxu0
        %v1399 = vadd.f32 0.0, %v1398
        %v1400 = vpop.f32.mrb[0].mxu0
        %1401 = vmatprep.mubr.bf16.mxu0 0
        %1402 = vmatmul.mubr.bf16.gmra.mrb[0].mxu0 %v910
        %v1403 = vpop.f32.mrb[0].mxu0
        %v1404 = vadd.f32 0.0, %v1403
        %v1405 = vpop.f32.mrb[0].mxu0
        %v1406 = vpop.f32.mrb[0].mxu0
        %v1407 = vadd.f32 0.0, %v1406
        %v1408 = vpop.f32.mrb[0].mxu0
        %1409 = vmatprep.mubr.bf16.mxu0 0
        %1410 = vmatmul.mubr.bf16.gmra.mrb[0].mxu0 %v1316
        %v1411 = vpop.f32.mrb[0].mxu0
        %v1412 = vadd.f32 0.0, %v1411
        %v1413 = vpop.f32.mrb[0].mxu0
        %v1414 = vpop.f32.mrb[0].mxu0
        %v1415 = vadd.f32 0.0, %v1414
        %v1416 = vpop.f32.mrb[0].mxu0
        %1417 = vdwg.mxu0
        %v1418 = vadd.f32 %v1286, %v1356
        %v1419 = vadd.f32 %v1287, %v1359
        %v1420 = vadd.f32 %v1288, %v1364
        %v1421 = vadd.f32 %v1289, %v1367
        %v1422 = vadd.f32 %v1290, %v1372
        %v1423 = vadd.f32 %v1291, %v1375
        %v1424 = vadd.f32 %v1292, %v1380
        %v1425 = vadd.f32 %v1293, %v1383
        %v1426 = vadd.f32 %v1294, %v1388
        %v1427 = vadd.f32 %v1295, %v1391
        %v1428 = vadd.f32 %v1296, %v1396
        %v1429 = vadd.f32 %v1297, %v1399
        %v1430 = vadd.f32 %v1298, %v1404
        %v1431 = vadd.f32 %v1299, %v1407
        %v1432 = vadd.f32 %v1300, %v1412
        %v1433 = vadd.f32 %v1301, %v1415
        %s1434 = scalar_lea.vmem %s1, 12
        %v1435 = vld [vmem:[%s1434] sm:$0x3]
        %v1438 = vunpack.c.l.b16 %v280
        %v1439 = vunpack.c.l.b16 %v281
        %v1440 = vpack.c.b16 %v1439, %v1438
        %v1442 = vsel %vm505, %v1440, 0
        %v1445 = vsel %vm530, %v1435, 0
        %1447 = vmatprep.subr.bf16.mxu0 0
        %1448 = vmatpush1.bf16.msra.mxu0 %v1445
        %1449 = vmatprep.subr.bf16.mxu0 0
        %1450 = vmatpush1.bf16.msra.mxu0 0
        %1451 = vmatprep.subr.bf16.mxu0 0
        %1452 = vmatpush1.bf16.msra.mxu0 0
        %1453 = vmatprep.subr.bf16.mxu0 0
        %1454 = vmatpush1.bf16.msra.mxu0 0
        %1455 = vmatprep.subr.bf16.mxu0 0
        %1456 = vmatpush1.bf16.msra.mxu0 0
        %1457 = vmatprep.subr.bf16.mxu0 0
        %1458 = vmatpush1.bf16.msra.mxu0 0
        %1459 = vmatprep.subr.bf16.mxu0 0
        %1460 = vmatpush1.bf16.msra.mxu0 0
        %1461 = vmatprep.subr.bf16.mxu0 0
        %1462 = vmatpush1.bf16.msra.mxu0 0
        %1463 = vmatprep.subr.bf16.mxu0 0
        %1464 = vmatpush1.bf16.msra.mxu0 0
        %1465 = vmatprep.subr.bf16.mxu0 0
        %1466 = vmatpush1.bf16.msra.mxu0 0
        %1467 = vmatprep.subr.bf16.mxu0 0
        %1468 = vmatpush1.bf16.msra.mxu0 0
        %1469 = vmatprep.subr.bf16.mxu0 0
        %1470 = vmatpush1.bf16.msra.mxu0 0
        %1471 = vmatprep.subr.bf16.mxu0 0
        %1472 = vmatpush1.bf16.msra.mxu0 0
        %1473 = vmatprep.subr.bf16.mxu0 0
        %1474 = vmatpush1.bf16.msra.mxu0 0
        %1475 = vmatprep.subr.bf16.mxu0 0
        %1476 = vmatpush1.bf16.msra.mxu0 0
        %1477 = vmatprep.subr.bf16.mxu0 0
        %1478 = vmatpush1.bf16.msra.mxu0 0
        %1479 = vmatprep.mubr.bf16.mxu0 0
        %1480 = vmatmul.mubr.bf16.gmra.mrb[0].mxu0 %v678
        %v1481 = vpop.f32.mrb[0].mxu0
        %v1482 = vadd.f32 0.0, %v1481
        %v1483 = vpop.f32.mrb[0].mxu0
        %v1484 = vpop.f32.mrb[0].mxu0
        %v1485 = vadd.f32 0.0, %v1484
        %v1486 = vpop.f32.mrb[0].mxu0
        %1487 = vmatprep.mubr.bf16.mxu0 0
        %1488 = vmatmul.mubr.bf16.gmra.mrb[0].mxu0 %v681
        %v1489 = vpop.f32.mrb[0].mxu0
        %v1490 = vadd.f32 0.0, %v1489
        %v1491 = vpop.f32.mrb[0].mxu0
        %v1492 = vpop.f32.mrb[0].mxu0
        %v1493 = vadd.f32 0.0, %v1492
        %v1494 = vpop.f32.mrb[0].mxu0
        %1495 = vmatprep.mubr.bf16.mxu0 0
        %1496 = vmatmul.mubr.bf16.gmra.mrb[0].mxu0 %v684
        %v1497 = vpop.f32.mrb[0].mxu0
        %v1498 = vadd.f32 0.0, %v1497
        %v1499 = vpop.f32.mrb[0].mxu0
        %v1500 = vpop.f32.mrb[0].mxu0
        %v1501 = vadd.f32 0.0, %v1500
        %v1502 = vpop.f32.mrb[0].mxu0
        %1503 = vmatprep.mubr.bf16.mxu0 0
        %1504 = vmatmul.mubr.bf16.gmra.mrb[0].mxu0 %v687
        %v1505 = vpop.f32.mrb[0].mxu0
        %v1506 = vadd.f32 0.0, %v1505
        %v1507 = vpop.f32.mrb[0].mxu0
        %v1508 = vpop.f32.mrb[0].mxu0
        %v1509 = vadd.f32 0.0, %v1508
        %v1510 = vpop.f32.mrb[0].mxu0
        %1511 = vmatprep.mubr.bf16.mxu0 0
        %1512 = vmatmul.mubr.bf16.gmra.mrb[0].mxu0 %v690
        %v1513 = vpop.f32.mrb[0].mxu0
        %v1514 = vadd.f32 0.0, %v1513
        %v1515 = vpop.f32.mrb[0].mxu0
        %v1516 = vpop.f32.mrb[0].mxu0
        %v1517 = vadd.f32 0.0, %v1516
        %v1518 = vpop.f32.mrb[0].mxu0
        %1519 = vmatprep.mubr.bf16.mxu0 0
        %1520 = vmatmul.mubr.bf16.gmra.mrb[0].mxu0 %v693
        %v1521 = vpop.f32.mrb[0].mxu0
        %v1522 = vadd.f32 0.0, %v1521
        %v1523 = vpop.f32.mrb[0].mxu0
        %v1524 = vpop.f32.mrb[0].mxu0
        %v1525 = vadd.f32 0.0, %v1524
        %v1526 = vpop.f32.mrb[0].mxu0
        %1527 = vmatprep.mubr.bf16.mxu0 0
        %1528 = vmatmul.mubr.bf16.gmra.mrb[0].mxu0 %v1036
        %v1529 = vpop.f32.mrb[0].mxu0
        %v1530 = vadd.f32 0.0, %v1529
        %v1531 = vpop.f32.mrb[0].mxu0
        %v1532 = vpop.f32.mrb[0].mxu0
        %v1533 = vadd.f32 0.0, %v1532
        %v1534 = vpop.f32.mrb[0].mxu0
        %1535 = vmatprep.mubr.bf16.mxu0 0
        %1536 = vmatmul.mubr.bf16.gmra.mrb[0].mxu0 %v1442
        %v1537 = vpop.f32.mrb[0].mxu0
        %v1538 = vadd.f32 0.0, %v1537
        %v1539 = vpop.f32.mrb[0].mxu0
        %v1540 = vpop.f32.mrb[0].mxu0
        %v1541 = vadd.f32 0.0, %v1540
        %v1542 = vpop.f32.mrb[0].mxu0
        %1543 = vdwg.mxu0
        %v1544 = vadd.f32 %v1418, %v1482
        %v1545 = vadd.f32 %v1419, %v1485
        %v1546 = vadd.f32 %v1420, %v1490
        %v1547 = vadd.f32 %v1421, %v1493
        %v1548 = vadd.f32 %v1422, %v1498
        %v1549 = vadd.f32 %v1423, %v1501
        %v1550 = vadd.f32 %v1424, %v1506
        %v1551 = vadd.f32 %v1425, %v1509
        %v1552 = vadd.f32 %v1426, %v1514
        %v1553 = vadd.f32 %v1427, %v1517
        %v1554 = vadd.f32 %v1428, %v1522
        %v1555 = vadd.f32 %v1429, %v1525
        %v1556 = vadd.f32 %v1430, %v1530
        %v1557 = vadd.f32 %v1431, %v1533
        %v1558 = vadd.f32 %v1432, %v1538
        %v1559 = vadd.f32 %v1433, %v1541
        %v1561 = vshrl.u32 %v280, 16
        %v1563 = vrot.slane %v1561, 4
        %v1564 = vshll.u32 %v280, 16
        %v1566 = vrot.slane %v1564, 5
        %v1567 = vor.u32 %v1563, %v1566
        %v1568 = vrot.slane %v1567, 4
        %v1570 = vshll.u32 %v281, 16
        %v1572 = vrot.slane %v1570, 5
        %v1573 = vsel %vm286, %v1568, %v1572
        %v1574 = vshrl.u32 %v281, 16
        %v1576 = vrot.slane %v1574, 4
        %v1577 = vor.u32 %v1576, %v1572
        %v1578 = vrot.slane %v1577, 4
        %v1580 = vshll.u32 %v282, 16
        %v1582 = vrot.slane %v1580, 5
        %v1583 = vsel %vm286, %v1578, %v1582
        %s1584 = scalar_lea.vmem %s1, 14
        %v1585 = vld [vmem:[%s1584] sm:$0x3]
        %v1586 = vunpack.c.l.b16 %v1573
        %v1587 = vunpack.c.l.b16 %v1583
        %v1588 = vpack.c.b16 %v1587, %v1586
        %v1590 = vsel %vm505, %v1588, 0
        %v1593 = vsel %vm530, %v1585, 0
        %1595 = vmatprep.subr.bf16.mxu0 0
        %1596 = vmatpush1.bf16.msra.mxu0 %v1593
        %1597 = vmatprep.subr.bf16.mxu0 0
        %1598 = vmatpush1.bf16.msra.mxu0 0
        %1599 = vmatprep.subr.bf16.mxu0 0
        %1600 = vmatpush1.bf16.msra.mxu0 0
        %1601 = vmatprep.subr.bf16.mxu0 0
        %1602 = vmatpush1.bf16.msra.mxu0 0
        %1603 = vmatprep.subr.bf16.mxu0 0
        %1604 = vmatpush1.bf16.msra.mxu0 0
        %1605 = vmatprep.subr.bf16.mxu0 0
        %1606 = vmatpush1.bf16.msra.mxu0 0
        %1607 = vmatprep.subr.bf16.mxu0 0
        %1608 = vmatpush1.bf16.msra.mxu0 0
        %1609 = vmatprep.subr.bf16.mxu0 0
        %1610 = vmatpush1.bf16.msra.mxu0 0
        %1611 = vmatprep.subr.bf16.mxu0 0
        %1612 = vmatpush1.bf16.msra.mxu0 0
        %1613 = vmatprep.subr.bf16.mxu0 0
        %1614 = vmatpush1.bf16.msra.mxu0 0
        %1615 = vmatprep.subr.bf16.mxu0 0
        %1616 = vmatpush1.bf16.msra.mxu0 0
        %1617 = vmatprep.subr.bf16.mxu0 0
        %1618 = vmatpush1.bf16.msra.mxu0 0
        %1619 = vmatprep.subr.bf16.mxu0 0
        %1620 = vmatpush1.bf16.msra.mxu0 0
        %1621 = vmatprep.subr.bf16.mxu0 0
        %1622 = vmatpush1.bf16.msra.mxu0 0
        %1623 = vmatprep.subr.bf16.mxu0 0
        %1624 = vmatpush1.bf16.msra.mxu0 0
        %1625 = vmatprep.subr.bf16.mxu0 0
        %1626 = vmatpush1.bf16.msra.mxu0 0
        %1627 = vmatprep.mubr.bf16.mxu0 0
        %1628 = vmatmul.mubr.bf16.gmra.mrb[0].mxu0 %v513
        %v1629 = vpop.f32.mrb[0].mxu0
        %v1630 = vadd.f32 0.0, %v1629
        %v1631 = vpop.f32.mrb[0].mxu0
        %v1632 = vpop.f32.mrb[0].mxu0
        %v1633 = vadd.f32 0.0, %v1632
        %v1634 = vpop.f32.mrb[0].mxu0
        %1635 = vmatprep.mubr.bf16.mxu0 0
        %1636 = vmatmul.mubr.bf16.gmra.mrb[0].mxu0 %v516
        %v1637 = vpop.f32.mrb[0].mxu0
        %v1638 = vadd.f32 0.0, %v1637
        %v1639 = vpop.f32.mrb[0].mxu0
        %v1640 = vpop.f32.mrb[0].mxu0
        %v1641 = vadd.f32 0.0, %v1640
        %v1642 = vpop.f32.mrb[0].mxu0
        %1643 = vmatprep.mubr.bf16.mxu0 0
        %1644 = vmatmul.mubr.bf16.gmra.mrb[0].mxu0 %v519
        %v1645 = vpop.f32.mrb[0].mxu0
        %v1646 = vadd.f32 0.0, %v1645
        %v1647 = vpop.f32.mrb[0].mxu0
        %v1648 = vpop.f32.mrb[0].mxu0
        %v1649 = vadd.f32 0.0, %v1648
        %v1650 = vpop.f32.mrb[0].mxu0
        %1651 = vmatprep.mubr.bf16.mxu0 0
        %1652 = vmatmul.mubr.bf16.gmra.mrb[0].mxu0 %v522
        %v1653 = vpop.f32.mrb[0].mxu0
        %v1654 = vadd.f32 0.0, %v1653
        %v1655 = vpop.f32.mrb[0].mxu0
        %v1656 = vpop.f32.mrb[0].mxu0
        %v1657 = vadd.f32 0.0, %v1656
        %v1658 = vpop.f32.mrb[0].mxu0
        %1659 = vmatprep.mubr.bf16.mxu0 0
        %1660 = vmatmul.mubr.bf16.gmra.mrb[0].mxu0 %v525
        %v1661 = vpop.f32.mrb[0].mxu0
        %v1662 = vadd.f32 0.0, %v1661
        %v1663 = vpop.f32.mrb[0].mxu0
        %v1664 = vpop.f32.mrb[0].mxu0
        %v1665 = vadd.f32 0.0, %v1664
        %v1666 = vpop.f32.mrb[0].mxu0
        %1667 = vmatprep.mubr.bf16.mxu0 0
        %1668 = vmatmul.mubr.bf16.gmra.mrb[0].mxu0 %v528
        %v1669 = vpop.f32.mrb[0].mxu0
        %v1670 = vadd.f32 0.0, %v1669
        %v1671 = vpop.f32.mrb[0].mxu0
        %v1672 = vpop.f32.mrb[0].mxu0
        %v1673 = vadd.f32 0.0, %v1672
        %v1674 = vpop.f32.mrb[0].mxu0
        %1675 = vmatprep.mubr.bf16.mxu0 0
        %1676 = vmatmul.mubr.bf16.gmra.mrb[0].mxu0 %v1184
        %v1677 = vpop.f32.mrb[0].mxu0
        %v1678 = vadd.f32 0.0, %v1677
        %v1679 = vpop.f32.mrb[0].mxu0
        %v1680 = vpop.f32.mrb[0].mxu0
        %v1681 = vadd.f32 0.0, %v1680
        %v1682 = vpop.f32.mrb[0].mxu0
        %1683 = vmatprep.mubr.bf16.mxu0 0
        %1684 = vmatmul.mubr.bf16.gmra.mrb[0].mxu0 %v1590
        %v1685 = vpop.f32.mrb[0].mxu0
        %v1686 = vadd.f32 0.0, %v1685
        %v1687 = vpop.f32.mrb[0].mxu0
        %v1688 = vpop.f32.mrb[0].mxu0
        %v1689 = vadd.f32 0.0, %v1688
        %v1690 = vpop.f32.mrb[0].mxu0
        %1691 = vdwg.mxu0
        %v1692 = vadd.f32 %v1544, %v1630
        %v1693 = vadd.f32 %v1545, %v1633
        %v1694 = vadd.f32 %v1546, %v1638
        %v1695 = vadd.f32 %v1547, %v1641
        %v1696 = vadd.f32 %v1548, %v1646
        %v1697 = vadd.f32 %v1549, %v1649
        %v1698 = vadd.f32 %v1550, %v1654
        %v1699 = vadd.f32 %v1551, %v1657
        %v1700 = vadd.f32 %v1552, %v1662
        %v1701 = vadd.f32 %v1553, %v1665
        %v1702 = vadd.f32 %v1554, %v1670
        %v1703 = vadd.f32 %v1555, %v1673
        %v1704 = vadd.f32 %v1556, %v1678
        %v1705 = vadd.f32 %v1557, %v1681
        %v1706 = vadd.f32 %v1558, %v1686
        %v1707 = vadd.f32 %v1559, %v1689
        %v1709 = vrot.slane %v280, 5
        %v1710 = vrot.slane %v1709, 4
        %v1711 = vrot.slane %v281, 5
        %v1712 = vsel %vm805, %v1710, %v1711
        %v1713 = vrot.slane %v1711, 4
        %v1714 = vrot.slane %v282, 5
        %v1715 = vsel %vm805, %v1713, %v1714
        %s1716 = scalar_lea.vmem %s1, 16
        %v1717 = vld [vmem:[%s1716] sm:$0x3]
        %v1718 = vunpack.c.l.b16 %v1712
        %v1719 = vunpack.c.l.b16 %v1715
        %v1720 = vpack.c.b16 %v1719, %v1718
        %v1722 = vsel %vm505, %v1720, 0
        %v1725 = vsel %vm530, %v1717, 0
        %1727 = vmatprep.subr.bf16.mxu0 0
        %1728 = vmatpush1.bf16.msra.mxu0 %v1725
        %1729 = vmatprep.subr.bf16.mxu0 0
        %1730 = vmatpush1.bf16.msra.mxu0 0
        %1731 = vmatprep.subr.bf16.mxu0 0
        %1732 = vmatpush1.bf16.msra.mxu0 0
        %1733 = vmatprep.subr.bf16.mxu0 0
        %1734 = vmatpush1.bf16.msra.mxu0 0
        %1735 = vmatprep.subr.bf16.mxu0 0
        %1736 = vmatpush1.bf16.msra.mxu0 0
        %1737 = vmatprep.subr.bf16.mxu0 0
        %1738 = vmatpush1.bf16.msra.mxu0 0
        %1739 = vmatprep.subr.bf16.mxu0 0
        %1740 = vmatpush1.bf16.msra.mxu0 0
        %1741 = vmatprep.subr.bf16.mxu0 0
        %1742 = vmatpush1.bf16.msra.mxu0 0
        %1743 = vmatprep.subr.bf16.mxu0 0
        %1744 = vmatpush1.bf16.msra.mxu0 0
        %1745 = vmatprep.subr.bf16.mxu0 0
        %1746 = vmatpush1.bf16.msra.mxu0 0
        %1747 = vmatprep.subr.bf16.mxu0 0
        %1748 = vmatpush1.bf16.msra.mxu0 0
        %1749 = vmatprep.subr.bf16.mxu0 0
        %1750 = vmatpush1.bf16.msra.mxu0 0
        %1751 = vmatprep.subr.bf16.mxu0 0
        %1752 = vmatpush1.bf16.msra.mxu0 0
        %1753 = vmatprep.subr.bf16.mxu0 0
        %1754 = vmatpush1.bf16.msra.mxu0 0
        %1755 = vmatprep.subr.bf16.mxu0 0
        %1756 = vmatpush1.bf16.msra.mxu0 0
        %1757 = vmatprep.subr.bf16.mxu0 0
        %1758 = vmatpush1.bf16.msra.mxu0 0
        %1759 = vmatprep.mubr.bf16.mxu0 0
        %1760 = vmatmul.mubr.bf16.gmra.mrb[0].mxu0 %v895
        %v1761 = vpop.f32.mrb[0].mxu0
        %v1762 = vadd.f32 0.0, %v1761
        %v1763 = vpop.f32.mrb[0].mxu0
        %v1764 = vpop.f32.mrb[0].mxu0
        %v1765 = vadd.f32 0.0, %v1764
        %v1766 = vpop.f32.mrb[0].mxu0
        %1767 = vmatprep.mubr.bf16.mxu0 0
        %1768 = vmatmul.mubr.bf16.gmra.mrb[0].mxu0 %v898
        %v1769 = vpop.f32.mrb[0].mxu0
        %v1770 = vadd.f32 0.0, %v1769
        %v1771 = vpop.f32.mrb[0].mxu0
        %v1772 = vpop.f32.mrb[0].mxu0
        %v1773 = vadd.f32 0.0, %v1772
        %v1774 = vpop.f32.mrb[0].mxu0
        %1775 = vmatprep.mubr.bf16.mxu0 0
        %1776 = vmatmul.mubr.bf16.gmra.mrb[0].mxu0 %v901
        %v1777 = vpop.f32.mrb[0].mxu0
        %v1778 = vadd.f32 0.0, %v1777
        %v1779 = vpop.f32.mrb[0].mxu0
        %v1780 = vpop.f32.mrb[0].mxu0
        %v1781 = vadd.f32 0.0, %v1780
        %v1782 = vpop.f32.mrb[0].mxu0
        %1783 = vmatprep.mubr.bf16.mxu0 0
        %1784 = vmatmul.mubr.bf16.gmra.mrb[0].mxu0 %v904
        %v1785 = vpop.f32.mrb[0].mxu0
        %v1786 = vadd.f32 0.0, %v1785
        %v1787 = vpop.f32.mrb[0].mxu0
        %v1788 = vpop.f32.mrb[0].mxu0
        %v1789 = vadd.f32 0.0, %v1788
        %v1790 = vpop.f32.mrb[0].mxu0
        %1791 = vmatprep.mubr.bf16.mxu0 0
        %1792 = vmatmul.mubr.bf16.gmra.mrb[0].mxu0 %v907
        %v1793 = vpop.f32.mrb[0].mxu0
        %v1794 = vadd.f32 0.0, %v1793
        %v1795 = vpop.f32.mrb[0].mxu0
        %v1796 = vpop.f32.mrb[0].mxu0
        %v1797 = vadd.f32 0.0, %v1796
        %v1798 = vpop.f32.mrb[0].mxu0
        %1799 = vmatprep.mubr.bf16.mxu0 0
        %1800 = vmatmul.mubr.bf16.gmra.mrb[0].mxu0 %v910
        %v1801 = vpop.f32.mrb[0].mxu0
        %v1802 = vadd.f32 0.0, %v1801
        %v1803 = vpop.f32.mrb[0].mxu0
        %v1804 = vpop.f32.mrb[0].mxu0
        %v1805 = vadd.f32 0.0, %v1804
        %v1806 = vpop.f32.mrb[0].mxu0
        %1807 = vmatprep.mubr.bf16.mxu0 0
        %1808 = vmatmul.mubr.bf16.gmra.mrb[0].mxu0 %v1316
        %v1809 = vpop.f32.mrb[0].mxu0
        %v1810 = vadd.f32 0.0, %v1809
        %v1811 = vpop.f32.mrb[0].mxu0
        %v1812 = vpop.f32.mrb[0].mxu0
        %v1813 = vadd.f32 0.0, %v1812
        %v1814 = vpop.f32.mrb[0].mxu0
        %1815 = vmatprep.mubr.bf16.mxu0 0
        %1816 = vmatmul.mubr.bf16.gmra.mrb[0].mxu0 %v1722
        %v1817 = vpop.f32.mrb[0].mxu0
        %v1818 = vadd.f32 0.0, %v1817
        %v1819 = vpop.f32.mrb[0].mxu0
        %v1820 = vpop.f32.mrb[0].mxu0
        %v1821 = vadd.f32 0.0, %v1820
        %v1822 = vpop.f32.mrb[0].mxu0
        %1823 = vdwg.mxu0
        %v1824 = vadd.f32 %v1692, %v1762
        %v1825 = vadd.f32 %v1693, %v1765
        %v1826 = vadd.f32 %v1694, %v1770
        %v1827 = vadd.f32 %v1695, %v1773
        %v1828 = vadd.f32 %v1696, %v1778
        %v1829 = vadd.f32 %v1697, %v1781
        %v1830 = vadd.f32 %v1698, %v1786
        %v1831 = vadd.f32 %v1699, %v1789
        %v1832 = vadd.f32 %v1700, %v1794
        %v1833 = vadd.f32 %v1701, %v1797
        %v1834 = vadd.f32 %v1702, %v1802
        %v1835 = vadd.f32 %v1703, %v1805
        %v1836 = vadd.f32 %v1704, %v1810
        %v1837 = vadd.f32 %v1705, %v1813
        %v1838 = vadd.f32 %v1706, %v1818
        %v1839 = vadd.f32 %v1707, %v1821
        %v1840 = vld [vmem:[%s2] sm:$0x1]
        %v1842 = vlaneseq
        %v1843 = vshrl.u32 %v1842, 7
        %v1844 = vsub.s32 0, %v1843
        %v1845 = vrot.slane %v1840, %v1844
        %v1847 = vadd.f32 %v1824, %v1845
        %v1848 = vadd.f32 %v1825, %v1845
        %v1849 = vadd.f32 %v1826, %v1845
        %v1850 = vadd.f32 %v1827, %v1845
        %v1851 = vadd.f32 %v1828, %v1845
        %v1852 = vadd.f32 %v1829, %v1845
        %v1853 = vadd.f32 %v1830, %v1845
        %v1854 = vadd.f32 %v1831, %v1845
        %v1855 = vadd.f32 %v1832, %v1845
        %v1856 = vadd.f32 %v1833, %v1845
        %v1857 = vadd.f32 %v1834, %v1845
        %v1858 = vadd.f32 %v1835, %v1845
        %v1859 = vadd.f32 %v1836, %v1845
        %v1860 = vadd.f32 %v1837, %v1845
        %v1861 = vadd.f32 %v1838, %v1845
        %v1862 = vadd.f32 %v1839, %v1845
        %vm1863 = vcmp.gt.f32.partialorder %v1847, 0.0
        %vm1864 = vcmp.gt.f32.partialorder %v1848, 0.0
        %vm1865 = vcmp.gt.f32.partialorder %v1849, 0.0
        %vm1866 = vcmp.gt.f32.partialorder %v1850, 0.0
        %vm1867 = vcmp.gt.f32.partialorder %v1851, 0.0
        %vm1868 = vcmp.gt.f32.partialorder %v1852, 0.0
        %vm1869 = vcmp.gt.f32.partialorder %v1853, 0.0
        %vm1870 = vcmp.gt.f32.partialorder %v1854, 0.0
        %vm1871 = vcmp.gt.f32.partialorder %v1855, 0.0
        %vm1872 = vcmp.gt.f32.partialorder %v1856, 0.0
        %vm1873 = vcmp.gt.f32.partialorder %v1857, 0.0
        %vm1874 = vcmp.gt.f32.partialorder %v1858, 0.0
        %vm1875 = vcmp.gt.f32.partialorder %v1859, 0.0
        %vm1876 = vcmp.gt.f32.partialorder %v1860, 0.0
        %vm1877 = vcmp.gt.f32.partialorder %v1861, 0.0
        %vm1878 = vcmp.gt.f32.partialorder %v1862, 0.0
        %v1879 = vmul.f32 %v1847, 0.1
        %v1880 = vmul.f32 %v1848, 0.1
        %v1881 = vmul.f32 %v1849, 0.1
        %v1882 = vmul.f32 %v1850, 0.1
        %v1883 = vmul.f32 %v1851, 0.1
        %v1884 = vmul.f32 %v1852, 0.1
        %v1885 = vmul.f32 %v1853, 0.1
        %v1886 = vmul.f32 %v1854, 0.1
        %v1887 = vmul.f32 %v1855, 0.1
        %v1888 = vmul.f32 %v1856, 0.1
        %v1889 = vmul.f32 %v1857, 0.1
        %v1890 = vmul.f32 %v1858, 0.1
        %v1891 = vmul.f32 %v1859, 0.1
        %v1892 = vmul.f32 %v1860, 0.1
        %v1893 = vmul.f32 %v1861, 0.1
        %v1894 = vmul.f32 %v1862, 0.1
        %v1895 = vsel %vm1863, %v1847, %v1879
        %v1896 = vsel %vm1864, %v1848, %v1880
        %v1897 = vsel %vm1865, %v1849, %v1881
        %v1898 = vsel %vm1866, %v1850, %v1882
        %v1899 = vsel %vm1867, %v1851, %v1883
        %v1900 = vsel %vm1868, %v1852, %v1884
        %v1901 = vsel %vm1869, %v1853, %v1885
        %v1902 = vsel %vm1870, %v1854, %v1886
        %v1903 = vsel %vm1871, %v1855, %v1887
        %v1904 = vsel %vm1872, %v1856, %v1888
        %v1905 = vsel %vm1873, %v1857, %v1889
        %v1906 = vsel %vm1874, %v1858, %v1890
        %v1907 = vsel %vm1875, %v1859, %v1891
        %v1908 = vsel %vm1876, %v1860, %v1892
        %v1909 = vsel %vm1877, %v1861, %v1893
        %v1910 = vsel %vm1878, %v1862, %v1894
        %v1911 = vpack.c.bf16 %v1896, %v1895
        %v1912 = vpack.c.bf16 %v1898, %v1897
        %v1913 = vpack.c.bf16 %v1900, %v1899
        %v1914 = vpack.c.bf16 %v1902, %v1901
        %v1915 = vpack.c.bf16 %v1904, %v1903
        %v1916 = vpack.c.bf16 %v1906, %v1905
        %v1917 = vpack.c.bf16 %v1908, %v1907
        %v1918 = vpack.c.bf16 %v1910, %v1909
        %v1919 = vld [vmem:[%s3] sm:$0xf]
        %v1920 = vld [vmem:[%s3 + $0x4] sm:$0xf]
        %v1921 = vld [vmem:[%s3 + $0x8] sm:$0xf]
        %v1922 = vld [vmem:[%s3 + $0xc] sm:$0xf]
        %v1923 = vld [vmem:[%s3 + $0x10] sm:$0xf]
        %v1924 = vld [vmem:[%s3 + $0x14] sm:$0xf]
        %v1925 = vld [vmem:[%s3 + $0x18] sm:$0xf]
        %v1926 = vld [vmem:[%s3 + $0x1c] sm:$0xf]
        %v1927 = vld [vmem:[%s3 + $0x20] sm:$0xf]
        %v1928 = vld [vmem:[%s3 + $0x24] sm:$0xf]
        %v1929 = vld [vmem:[%s3 + $0x28] sm:$0xf]
        %v1930 = vld [vmem:[%s3 + $0x2c] sm:$0xf]
        %v1931 = vld [vmem:[%s3 + $0x30] sm:$0xf]
        %v1932 = vld [vmem:[%s3 + $0x34] sm:$0xf]
        %v1933 = vld [vmem:[%s3 + $0x38] sm:$0xf]
        %v1934 = vld [vmem:[%s3 + $0x3c] sm:$0xf]
        %v1935 = vld [vmem:[%s4] sm:$0x1]
        %v1937 = vlaneseq
        %v1938 = vshrl.u32 %v1937, 7
        %v1939 = vsub.s32 0, %v1938
        %v1940 = vrot.slane %v1935, %v1939
        %v1958 = vunpack.c.l.b16 %v1919
        %v1959 = vunpack.c.l.b16 %v1920
        %v1960 = vunpack.c.l.b16 %v1921
        %v1961 = vunpack.c.l.b16 %v1922
        %v1962 = vunpack.c.l.b16 %v1923
        %v1963 = vunpack.c.l.b16 %v1924
        %v1964 = vunpack.c.l.b16 %v1925
        %v1965 = vunpack.c.l.b16 %v1926
        %v1966 = vunpack.c.l.b16 %v1927
        %v1967 = vunpack.c.l.b16 %v1928
        %v1968 = vunpack.c.l.b16 %v1929
        %v1969 = vunpack.c.l.b16 %v1930
        %v1970 = vunpack.c.l.b16 %v1931
        %v1971 = vunpack.c.l.b16 %v1932
        %v1972 = vunpack.c.l.b16 %v1933
        %v1973 = vunpack.c.l.b16 %v1934
        %v1974 = vpack.c.b16 %v1959, %v1958
        %v1975 = vpack.c.b16 %v1961, %v1960
        %v1976 = vpack.c.b16 %v1963, %v1962
        %v1977 = vpack.c.b16 %v1965, %v1964
        %v1978 = vpack.c.b16 %v1967, %v1966
        %v1979 = vpack.c.b16 %v1969, %v1968
        %v1980 = vpack.c.b16 %v1971, %v1970
        %v1981 = vpack.c.b16 %v1973, %v1972
        %1990 = vmatprep.subr.bf16.mxu0 0
        %1991 = vmatpush1.bf16.msra.mxu0 %v1974
        %1992 = vmatprep.subr.bf16.mxu0 0
        %1993 = vmatpush1.bf16.msra.mxu0 %v1975
        %1994 = vmatprep.subr.bf16.mxu0 0
        %1995 = vmatpush1.bf16.msra.mxu0 %v1976
        %1996 = vmatprep.subr.bf16.mxu0 0
        %1997 = vmatpush1.bf16.msra.mxu0 %v1977
        %1998 = vmatprep.subr.bf16.mxu0 0
        %1999 = vmatpush1.bf16.msra.mxu0 %v1978
        %2000 = vmatprep.subr.bf16.mxu0 0
        %2001 = vmatpush1.bf16.msra.mxu0 %v1979
        %2002 = vmatprep.subr.bf16.mxu0 0
        %2003 = vmatpush1.bf16.msra.mxu0 %v1980
        %2004 = vmatprep.subr.bf16.mxu0 0
        %2005 = vmatpush1.bf16.msra.mxu0 %v1981
        %2006 = vmatprep.subr.bf16.mxu0 0
        %2007 = vmatpush1.bf16.msra.mxu0 0
        %2008 = vmatprep.subr.bf16.mxu0 0
        %2009 = vmatpush1.bf16.msra.mxu0 0
        %2010 = vmatprep.subr.bf16.mxu0 0
        %2011 = vmatpush1.bf16.msra.mxu0 0
        %2012 = vmatprep.subr.bf16.mxu0 0
        %2013 = vmatpush1.bf16.msra.mxu0 0
        %2014 = vmatprep.subr.bf16.mxu0 0
        %2015 = vmatpush1.bf16.msra.mxu0 0
        %2016 = vmatprep.subr.bf16.mxu0 0
        %2017 = vmatpush1.bf16.msra.mxu0 0
        %2018 = vmatprep.subr.bf16.mxu0 0
        %2019 = vmatpush1.bf16.msra.mxu0 0
        %2020 = vmatprep.subr.bf16.mxu0 0
        %2021 = vmatpush1.bf16.msra.mxu0 0
        %2022 = vmatprep.mubr.bf16.mxu0 0
        %2023 = vmatmul.mubr.bf16.gmra.mrb[0].mxu0 %v1911
        %v2024 = vpop.f32.mrb[0].mxu0
        %v2025 = vadd.f32 %v1940, %v2024
        %v2026 = vpop.f32.mrb[0].mxu0
        %v2027 = vpop.f32.mrb[0].mxu0
        %v2028 = vadd.f32 %v1940, %v2027
        %v2029 = vpop.f32.mrb[0].mxu0
        %2030 = vmatprep.mubr.bf16.mxu0 0
        %2031 = vmatmul.mubr.bf16.gmra.mrb[0].mxu0 %v1912
        %v2032 = vpop.f32.mrb[0].mxu0
        %v2033 = vadd.f32 %v1940, %v2032
        %v2034 = vpop.f32.mrb[0].mxu0
        %v2035 = vpop.f32.mrb[0].mxu0
        %v2036 = vadd.f32 %v1940, %v2035
        %v2037 = vpop.f32.mrb[0].mxu0
        %2038 = vmatprep.mubr.bf16.mxu0 0
        %2039 = vmatmul.mubr.bf16.gmra.mrb[0].mxu0 %v1913
        %v2040 = vpop.f32.mrb[0].mxu0
        %v2041 = vadd.f32 %v1940, %v2040
        %v2042 = vpop.f32.mrb[0].mxu0
        %v2043 = vpop.f32.mrb[0].mxu0
        %v2044 = vadd.f32 %v1940, %v2043
        %v2045 = vpop.f32.mrb[0].mxu0
        %2046 = vmatprep.mubr.bf16.mxu0 0
        %2047 = vmatmul.mubr.bf16.gmra.mrb[0].mxu0 %v1914
        %v2048 = vpop.f32.mrb[0].mxu0
        %v2049 = vadd.f32 %v1940, %v2048
        %v2050 = vpop.f32.mrb[0].mxu0
        %v2051 = vpop.f32.mrb[0].mxu0
        %v2052 = vadd.f32 %v1940, %v2051
        %v2053 = vpop.f32.mrb[0].mxu0
        %2054 = vmatprep.mubr.bf16.mxu0 0
        %2055 = vmatmul.mubr.bf16.gmra.mrb[0].mxu0 %v1915
        %v2056 = vpop.f32.mrb[0].mxu0
        %v2057 = vadd.f32 %v1940, %v2056
        %v2058 = vpop.f32.mrb[0].mxu0
        %v2059 = vpop.f32.mrb[0].mxu0
        %v2060 = vadd.f32 %v1940, %v2059
        %v2061 = vpop.f32.mrb[0].mxu0
        %2062 = vmatprep.mubr.bf16.mxu0 0
        %2063 = vmatmul.mubr.bf16.gmra.mrb[0].mxu0 %v1916
        %v2064 = vpop.f32.mrb[0].mxu0
        %v2065 = vadd.f32 %v1940, %v2064
        %v2066 = vpop.f32.mrb[0].mxu0
        %v2067 = vpop.f32.mrb[0].mxu0
        %v2068 = vadd.f32 %v1940, %v2067
        %v2069 = vpop.f32.mrb[0].mxu0
        %2070 = vmatprep.mubr.bf16.mxu0 0
        %2071 = vmatmul.mubr.bf16.gmra.mrb[0].mxu0 %v1917
        %v2072 = vpop.f32.mrb[0].mxu0
        %v2073 = vadd.f32 %v1940, %v2072
        %v2074 = vpop.f32.mrb[0].mxu0
        %v2075 = vpop.f32.mrb[0].mxu0
        %v2076 = vadd.f32 %v1940, %v2075
        %v2077 = vpop.f32.mrb[0].mxu0
        %2078 = vmatprep.mubr.bf16.mxu0 0
        %2079 = vmatmul.mubr.bf16.gmra.mrb[0].mxu0 %v1918
        %v2080 = vpop.f32.mrb[0].mxu0
        %v2081 = vadd.f32 %v1940, %v2080
        %v2082 = vpop.f32.mrb[0].mxu0
        %v2083 = vpop.f32.mrb[0].mxu0
        %v2084 = vadd.f32 %v1940, %v2083
        %v2085 = vpop.f32.mrb[0].mxu0
        %2086 = vdwg.mxu0
        %2087 = vst [vmem:[%s241] sm:$0xff] %v2025
        %2088 = vst [vmem:[%s241 + $0x8] sm:$0xff] %v2028
        %2089 = vst [vmem:[%s241 + $0x10] sm:$0xff] %v2033
        %2090 = vst [vmem:[%s241 + $0x18] sm:$0xff] %v2036
        %2091 = vst [vmem:[%s241 + $0x20] sm:$0xff] %v2041
        %2092 = vst [vmem:[%s241 + $0x28] sm:$0xff] %v2044
        %2093 = vst [vmem:[%s241 + $0x30] sm:$0xff] %v2049
        %2094 = vst [vmem:[%s241 + $0x38] sm:$0xff] %v2052
        %2095 = vst [vmem:[%s241 + $0x40] sm:$0xff] %v2057
        %2096 = vst [vmem:[%s241 + $0x48] sm:$0xff] %v2060
        %2097 = vst [vmem:[%s241 + $0x50] sm:$0xff] %v2065
        %2098 = vst [vmem:[%s241 + $0x58] sm:$0xff] %v2068
        %2099 = vst [vmem:[%s241 + $0x60] sm:$0xff] %v2073
        %2100 = vst [vmem:[%s241 + $0x68] sm:$0xff] %v2076
        %2101 = vst [vmem:[%s241 + $0x70] sm:$0xff] %v2081
        %2102 = vst [vmem:[%s241 + $0x78] sm:$0xff] %v2084
        %s2103 = sand.u32 %s153, 1
        %s2104 = scalar_lea.sflag [#allocation3], %s2103
        %s2105 = sand.u32 %s153, 1
        %s2106 = smul.addr %s2105, 128
        %s2107 = scalar_lea.vmem [#allocation2], %s2106
        // Predicated region
        $region41: #{tpu_custom_call.1} parent=39 // pred_check
          %p2108 = pneg %p163
        $region42: #{tpu_custom_call.1} parent=39 // pred_check_branch
          %2110 = sbr.rel (%p2108) target = $region44
        $region43: #{tpu_custom_call.1} parent=39 // pred_region
          %s2111 = smul.u32 8, %s24
          %s2113 = ssub.s32 2048, 2048
          %2114 = vsyncadd %s2104, %s2113
          %s2115 = smul.addr %s2111, 2
          %s2116 = smul.addr %s23, 32
          %s2117 = sadd.s32 %s2115, %s2116
          %s2118 = smul.addr %s2117, 128
          %s2119 = scalar_lea.hbm %s5, %s2118
          %s2120 = sshll.u32 %s2107, 4
          %s2121 = int_to_ptr.vmem [resolvable:$true] %s2120
          %2126 = dma.vmem_to_hbm [thread:$0]  %s2121, 2048, %s2119, %s2104, 128, 128, 8
        $region44: #{tpu_custom_call.1} parent=39 // pred_fallthru
          _
      $region40: #{tpu_custom_call.1} parent=5 // pred_fallthru
        _
      %p2127 = scmp.le.s32.totalorder 2, %s14
      // Predicated region
      $region45: #{tpu_custom_call.1} parent=5 // pred_check
        %p2128 = pneg %p2127
      $region46: #{tpu_custom_call.1} parent=5 // pred_check_branch
        %2130 = sbr.rel (%p2128) target = $region48
      $region47: #{tpu_custom_call.1} parent=5 // pred_region
        %s2131 = ssub.s32 %s14, 2
        // Predicated region
        $region49: #{tpu_custom_call.1} parent=47 // pred_check
          %p2132 = pneg %p169
        $region50: #{tpu_custom_call.1} parent=47 // pred_check_branch
          %2134 = sbr.rel (%p2132) target = $region52
        $region51: #{tpu_custom_call.1} parent=47 // pred_region
          %s2135 = sand.u32 %s154, 1
          %s2136 = scalar_lea.sflag [#allocation3], %s2135
          %s2137 = sand.u32 %s154, 1
          %s2138 = smul.addr %s2137, 128
          %s2139 = scalar_lea.vmem [#allocation2], %s2138
          %2140 = dma.done %s2136, 2048
        $region52: #{tpu_custom_call.1} parent=47 // pred_fallthru
          _
      $region48: #{tpu_custom_call.1} parent=5 // pred_fallthru
        _
    $region6: #{tpu_custom_call.1} parent=1 // loop_footer
      %s18 = sadd.s32 1, %s14
    $region7: #{tpu_custom_call.1} parent=1 // loop_footer_branch
      %13 = sbr.rel target = $region3
    $region8: #{tpu_custom_call.1} parent=1 // loop_exit
      _
    %2141 = vsyncpa [#allocation3], 1
    %s2142 = scalar_lea.sflag [#allocation3], 1
    %2143 = vsyncpa %s2142, 1

</llo_original>
